<compile_context>
chip_gen: v7x
topology: tpu7x:2x2x1
jax: 0.10.0
libtpu: 0.0.40
codegen_flags: <defaults>
</compile_context>

<pallas_src>
import jax
import jax.numpy as jnp
from jax import lax
from jax.experimental import pallas as pl
from jax.experimental.pallas import tpu as pltpu

EPS = 1e-5

# MXU operand dtype.  Kept f32 so the result stays within 1e-4 of the f32
# reference.  TODO(synk): bf16 operands give the native MXU rate on
# v5e/v6e/v7x; requires relaxing the tolerance to ~1e-2.
MATMUL_DTYPE = jnp.float32


def _mosaic_params(block_bytes, scratch_bytes=0):
    """Parallel batch grid + explicit VMEM budget for one pallas_call.

    Budget = double-buffered pipeline blocks + scratch + headroom, clamped to
    a ceiling safe on every generation (v7x: 64 MiB physical VMEM per TC;
    v5e/v6e default scoped limits are only 16/32 MiB).
    """
    need = 2 * block_bytes + scratch_bytes + (4 << 20)
    return pltpu.CompilerParams(
        dimension_semantics=("parallel",),
        vmem_limit_bytes=int(min(max(need, 16 << 20), 48 << 20)),
    )


# ---------------------------------------------------------------------------
# Shared conv body: 3x3 "SAME" conv of an un-padded (H, W, Cin) VMEM
# activation.  Zero padding happens in VMEM (never in HBM); the three kw taps
# are stacked on the channel (lane) axis once, giving 3 matmuls with K=3*Cin
# accumulated into a VMEM scratch ref.  Returns the (H*W, Cout) f32 slab.
# ---------------------------------------------------------------------------
def _conv3x3_taps(act, w_ref, acc_ref):
    H, W, Cin = act.shape
    HW = H * W
    dt = act.dtype

    # Zero-pad by 1 pixel on both spatial dims via concatenation (VMEM only).
    zrow = jnp.zeros((1, W, Cin), dt)
    xp = jnp.concatenate([zrow, act, zrow], axis=0)              # (H+2, W,   Cin)
    zcol = jnp.zeros((H + 2, 1, Cin), dt)
    xp = jnp.concatenate([zcol, xp, zcol], axis=1)               # (H+2, W+2, Cin)

    # im2col over the kw axis only, hoisted out of the kh loop:
    # three W-shifted windows stacked on the lane axis -> (H+2, W, 3*Cin).
    xcat = jnp.concatenate(
        [xp[:, 0:W, :], xp[:, 1:W + 1, :], xp[:, 2:W + 2, :]], axis=-1)
    flat = xcat.reshape((H + 2) * W, 3 * Cin).astype(MATMUL_DTYPE)

    # 3 MXU matmuls with K = 3*Cin; kh selects a row window of `flat` whose
    # offset kh*W is sublane-aligned whenever W % 8 == 0.
    for kh in range(3):
        strip = flat[kh * W:kh * W + HW, :]                      # (HW, 3*Cin)
        contrib = jnp.dot(strip, w_ref[kh].astype(MATMUL_DTYPE),
                          preferred_element_type=jnp.float32)
        if kh == 0:
            acc_ref[...] = contrib
        else:
            acc_ref[...] += contrib
    return acc_ref[...]


# ---------------------------------------------------------------------------
# Kernel A: fused 2x2 max-pool + 3x3 conv1 + per-sample BN1 statistics.
# ---------------------------------------------------------------------------
def _pool_conv_stats_kernel(x_ref, w_ref, y_ref, s_ref, q_ref, acc_ref):
    # x_ref: (1, H2, 2, W2, 2*Cin)  -- free wrapper reshape of the NHWC input
    # w_ref: (3, 3*Cin, Cm)          y_ref: (1, H2, W2, Cm)  (bias-free conv1)
    # s_ref, q_ref: (1, 1, Cm) per-sample channel sum / sum-of-squares
    _, H2, _, W2, C2 = x_ref.shape
    Cin = C2 // 2
    Cm = y_ref.shape[3]

    # MaxPool2d(2): W-pairs sit on the lane axis (static lane slices), H-pairs
    # on an untiled axis (static index).  No strided ref indexing.
    x = x_ref[0]                                      # (H2, 2, W2, 2*Cin)
    wmax = jnp.maximum(x[..., :Cin], x[..., Cin:])    # (H2, 2, W2, Cin)
    pooled = jnp.maximum(wmax[:, 0], wmax[:, 1])      # (H2, W2, Cin)

    acc = _conv3x3_taps(pooled, w_ref, acc_ref)       # (H2*W2, Cm) f32
    y_ref[0] = acc.reshape(H2, W2, Cm).astype(y_ref.dtype)
    s_ref[0] = jnp.sum(acc, axis=0, keepdims=True)
    q_ref[0] = jnp.sum(acc * acc, axis=0, keepdims=True)


# ---------------------------------------------------------------------------
# Kernel B: fused BN1 affine + ReLU prologue + 3x3 conv2 + BN2 statistics.
# ---------------------------------------------------------------------------
def _bnrelu_conv_stats_kernel(a_ref, sc_ref, sh_ref, w_ref,
                              y_ref, s_ref, q_ref, acc_ref):
    # a_ref: (1, H2, W2, Cm) raw conv1 output; sc/sh: (1, Cm) folded BN1 affine
    # w_ref: (3, 3*Cm, Co)   y_ref: (1, H2*W2, Co)  (bias-free conv2, flat)
    act = jnp.maximum(a_ref[0] * sc_ref[...] + sh_ref[...], 0.0)  # (H2, W2, Cm)
    acc = _conv3x3_taps(act, w_ref, acc_ref)                      # (HW, Co)
    y_ref[0] = acc.astype(y_ref.dtype)
    s_ref[0] = jnp.sum(acc, axis=0, keepdims=True)
    q_ref[0] = jnp.sum(acc * acc, axis=0, keepdims=True)


# ---------------------------------------------------------------------------
# Kernel C: BN2 affine + ReLU + in-kernel (HW,C)->(C,HW) transpose, so the
# wrapper only needs a free reshape to NCHW (no XLA transpose pass).
# ---------------------------------------------------------------------------
def _affine_relu_nchw_kernel(y_ref, sc_ref, sh_ref, o_ref):
    a = jnp.maximum(y_ref[0] * sc_ref[...] + sh_ref[...], 0.0)    # (HW, Co)
    o_ref[0] = jnp.transpose(a).astype(o_ref.dtype)               # (Co, HW)


# ---------------------------------------------------------------------------
# Tiny per-channel reductions over the fused stats -> folded BN scale / shift.
# (Stats are bias-free; the conv bias cancels exactly under training-mode BN.)
# ---------------------------------------------------------------------------
def _bn_affine(ch_sum, ch_sq, gamma, beta, count):
    total = jnp.sum(ch_sum, axis=(0, 1))                 # (C,)
    total_sq = jnp.sum(ch_sq, axis=(0, 1))               # (C,)
    mean = total / count
    var = total_sq / count - mean * mean                 # biased, f32 accum
    inv_std = lax.rsqrt(jnp.maximum(var, 0.0) + EPS)
    scale = gamma * inv_std
    shift = beta - mean * scale
    return scale.astype(jnp.float32), shift.astype(jnp.float32)


# ---------------------------------------------------------------------------
# EncoderBlock forward (NCHW in / NCHW out, matching the PyTorch module).
# ---------------------------------------------------------------------------
def encoder_block_forward(x_nchw, params):
    N, Cin, H, W = x_nchw.shape
    assert H % 2 == 0 and W % 2 == 0, "MaxPool2d(2) assumes even spatial dims"
    H2, W2 = H // 2, W // 2
    HW = H2 * W2
    Cm = params["w1"].shape[-1]
    Co = params["w2"].shape[-1]
    count = N * HW

    # NCHW -> NHWC once (XLA), then a *free* reshape exposing the 2x2 pooling
    # window: rows as (H2, 2) and the W-pair merged into the channel axis.
    x = jnp.transpose(x_nchw, (0, 2, 3, 1)).astype(jnp.float32)
    xr = x.reshape(N, H2, 2, W2, 2 * Cin)

    # Weights reshaped so the kw taps line up with the in-kernel lane-stacked
    # im2col: (3, 3, Cin, Cout) -> (3, 3*Cin, Cout).  Conv biases are NOT fed
    # to the kernels: training-mode BN cancels them exactly.
    w1r = params["w1"].reshape(3, 3 * Cin, Cm).astype(jnp.float32)
    w2r = params["w2"].reshape(3, 3 * Cm, Co).astype(jnp.float32)

    # --- Kernel A: maxpool + conv1 + BN1 batch statistics (fused) -----------
    # TODO(synk): add a halo'd H-strip grid axis here for real UNet sizes
    # (per-generation strip heights; v7x has only 64 MiB VMEM per TC).
    bytes_a = 4 * (H * W * Cin + 9 * Cin * Cm + HW * Cm + 2 * Cm)
    y1, s1, q1 = pl.pallas_call(
        _pool_conv_stats_kernel,
        grid=(N,),
        in_specs=[
            pl.BlockSpec((1, H2, 2, W2, 2 * Cin), lambda n: (n, 0, 0, 0, 0)),
            pl.BlockSpec((3, 3 * Cin, Cm), lambda n: (0, 0, 0)),
        ],
        out_specs=(
            pl.BlockSpec((1, H2, W2, Cm), lambda n: (n, 0, 0, 0)),
            pl.BlockSpec((1, 1, Cm), lambda n: (n, 0, 0)),
            pl.BlockSpec((1, 1, Cm), lambda n: (n, 0, 0)),
        ),
        out_shape=(
            jax.ShapeDtypeStruct((N, H2, W2, Cm), jnp.float32),
            jax.ShapeDtypeStruct((N, 1, Cm), jnp.float32),
            jax.ShapeDtypeStruct((N, 1, Cm), jnp.float32),
        ),
        scratch_shapes=[pltpu.VMEM((HW, Cm), jnp.float32)],
        compiler_params=_mosaic_params(bytes_a, scratch_bytes=4 * HW * Cm),
    )(xr, w1r)

    scale1, shift1 = _bn_affine(s1, q1, params["g1"], params["be1"], count)

    # --- Kernel B: BN1 affine + ReLU + conv2 + BN2 batch statistics (fused) --
    bytes_b = 4 * (HW * Cm + 2 * Cm + 9 * Cm * Co + HW * Co + 2 * Co)
    y2, s2, q2 = pl.pallas_call(
        _bnrelu_conv_stats_kernel,
        grid=(N,),
        in_specs=[
            pl.BlockSpec((1, H2, W2, Cm), lambda n: (n, 0, 0, 0)),
            pl.BlockSpec((1, Cm), lambda n: (0, 0)),
            pl.BlockSpec((1, Cm), lambda n: (0, 0)),
            pl.BlockSpec((3, 3 * Cm, Co), lambda n: (0, 0, 0)),
        ],
        out_specs=(
            pl.BlockSpec((1, HW, Co), lambda n: (n, 0, 0)),
            pl.BlockSpec((1, 1, Co), lambda n: (n, 0, 0)),
            pl.BlockSpec((1, 1, Co), lambda n: (n, 0, 0)),
        ),
        out_shape=(
            jax.ShapeDtypeStruct((N, HW, Co), jnp.float32),
            jax.ShapeDtypeStruct((N, 1, Co), jnp.float32),
            jax.ShapeDtypeStruct((N, 1, Co), jnp.float32),
        ),
        scratch_shapes=[pltpu.VMEM((HW, Co), jnp.float32)],
        compiler_params=_mosaic_params(bytes_b, scratch_bytes=4 * HW * Co),
    )(y1, scale1.reshape(1, Cm), shift1.reshape(1, Cm), w2r)

    scale2, shift2 = _bn_affine(s2, q2, params["g2"], params["be2"], count)

    # --- Kernel C: BN2 affine + ReLU, written NCHW-flat ----------------------
    bytes_c = 4 * (HW * Co + 2 * Co + Co * HW)
    out = pl.pallas_call(
        _affine_relu_nchw_kernel,
        grid=(N,),
        in_specs=[
            pl.BlockSpec((1, HW, Co), lambda n: (n, 0, 0)),
            pl.BlockSpec((1, Co), lambda n: (0, 0)),
            pl.BlockSpec((1, Co), lambda n: (0, 0)),
        ],
        out_specs=pl.BlockSpec((1, Co, HW), lambda n: (n, 0, 0)),
        out_shape=jax.ShapeDtypeStruct((N, Co, HW), jnp.float32),
        compiler_params=_mosaic_params(bytes_c),
    )(y2, scale2.reshape(1, Co), shift2.reshape(1, Co))

    return out.reshape(N, Co, H2, W2)     # free reshape; already NCHW order


# ---------------------------------------------------------------------------
# Pure-JAX reference for validation (matches nn.MaxPool2d + Conv2d + BN + ReLU).
# ---------------------------------------------------------------------------
def reference_forward(x_nchw, params):
    x = jnp.transpose(x_nchw, (0, 2, 3, 1))
    N, H, W, C = x.shape
    x = x.reshape(N, H // 2, 2, W // 2, 2, C).max(axis=(2, 4))

    def conv_bn_relu(x, w, b, g, be):
        y = lax.conv_general_dilated(
            x, w, window_strides=(1, 1), padding="SAME",
            dimension_numbers=("NHWC", "HWIO", "NHWC")) + b
        mean = jnp.mean(y, axis=(0, 1, 2))
        var = jnp.mean(jnp.square(y - mean), axis=(0, 1, 2))
        y = (y - mean) * lax.rsqrt(var + EPS) * g + be
        return jnp.maximum(y, 0.0)

    x = conv_bn_relu(x, params["w1"], params["b1"], params["g1"], params["be1"])
    x = conv_bn_relu(x, params["w2"], params["b2"], params["g2"], params["be2"])
    return jnp.transpose(x, (0, 3, 1, 2))


def init_params(key, in_channels, out_channels):
    mid_channels = out_channels
    ks = jax.random.split(key, 8)

    def conv_w(k, cin, cout):
        # HWIO layout (transpose of torch's (Cout, Cin, 3, 3))
        return 0.1 * jax.random.normal(k, (3, 3, cin, cout), jnp.float32)

    return {
        "w1": conv_w(ks[0], in_channels, mid_channels),
        "b1": 0.05 * jax.random.normal(ks[1], (mid_channels,), jnp.float32),
        "g1": 1.0 + 0.1 * jax.random.normal(ks[2], (mid_channels,), jnp.float32),
        "be1": 0.1 * jax.random.normal(ks[3], (mid_channels,), jnp.float32),
        "w2": conv_w(ks[4], mid_channels, out_channels),
        "b2": 0.05 * jax.random.normal(ks[5], (out_channels,), jnp.float32),
        "g2": 1.0 + 0.1 * jax.random.normal(ks[6], (out_channels,), jnp.float32),
        "be2": 0.1 * jax.random.normal(ks[7], (out_channels,), jnp.float32),
    }


if __name__ == "__main__":
    key = jax.random.PRNGKey(0)
    k_x, k_p = jax.random.split(key)

    in_channels, out_channels = 4, 8
    x = jax.random.normal(k_x, (2, in_channels, 16, 16), jnp.float32)  # NCHW
    params = init_params(k_p, in_channels, out_channels)

    out = jax.block_until_ready(jax.jit(encoder_block_forward)(x, params))
    assert out.shape == (2, out_channels, 8, 8), out.shape

    ref = jax.block_until_ready(jax.jit(reference_forward)(x, params))
    err = float(jnp.max(jnp.abs(out - ref)))
    assert jnp.allclose(out, ref, rtol=1e-4, atol=1e-4), err

    print("KERNEL_OK")
</pallas_src>

<mosaic_0001>
module attributes {stable_mosaic.version = 11 : i64} {
  func.func @_pool_conv_stats_kernel(%arg0: i32, %arg1: memref<1x8x2x8x8xf32, #tpu.memory_space<vmem>>, %arg2: memref<3x12x8xf32, #tpu.memory_space<vmem>>, %arg3: memref<1x8x8x8xf32, #tpu.memory_space<vmem>>, %arg4: memref<1x1x8xf32, #tpu.memory_space<vmem>>, %arg5: memref<1x1x8xf32, #tpu.memory_space<vmem>>, %arg6: memref<64x8xf32, #tpu.memory_space<vmem>>) attributes {dimension_semantics = [#tpu.dimension_semantics<parallel>], iteration_bounds = array<i64: 2>, scalar_prefetch = 0 : i64, scratch_operands = 1 : i64, tpu.core_type = #tpu.core_type<tc>, window_params = [{transform_indices = @transform_0, window_bounds = array<i64: 1, 8, 2, 8, 8>}, {pipeline_mode = #tpu.pipeline_mode<synchronous>, transform_indices = @transform_1, window_bounds = array<i64: 3, 12, 8>}, {transform_indices = @transform_2, window_bounds = array<i64: 1, 8, 8, 8>}, {transform_indices = @transform_3, window_bounds = array<i64: 1, 1, 8>}, {transform_indices = @transform_4, window_bounds = array<i64: 1, 1, 8>}]} {
    %c0 = arith.constant 0 : index
    %c0_0 = arith.constant 0 : index
    %c0_1 = arith.constant 0 : index
    %c0_2 = arith.constant 0 : index
    %c0_3 = arith.constant 0 : index
    %0 = vector.load %arg1[%c0, %c0_0, %c0_1, %c0_2, %c0_3] : memref<1x8x2x8x8xf32, #tpu.memory_space<vmem>>, vector<1x8x2x8x8xf32>
    %1 = vector.shape_cast %0 : vector<1x8x2x8x8xf32> to vector<8x2x8x8xf32>
    %2 = vector.extract_strided_slice %1 {offsets = [0, 0, 0, 0], sizes = [8, 2, 8, 4], strides = [1, 1, 1, 1]} : vector<8x2x8x8xf32> to vector<8x2x8x4xf32>
    %3 = vector.extract_strided_slice %1 {offsets = [0, 0, 0, 4], sizes = [8, 2, 8, 4], strides = [1, 1, 1, 1]} : vector<8x2x8x8xf32> to vector<8x2x8x4xf32>
    %4 = arith.maximumf %2, %3 : vector<8x2x8x4xf32>
    %5 = vector.extract_strided_slice %4 {offsets = [0, 0, 0, 0], sizes = [8, 1, 8, 4], strides = [1, 1, 1, 1]} : vector<8x2x8x4xf32> to vector<8x1x8x4xf32>
    %6 = vector.shape_cast %5 : vector<8x1x8x4xf32> to vector<8x8x4xf32>
    %7 = vector.extract_strided_slice %4 {offsets = [0, 1, 0, 0], sizes = [8, 1, 8, 4], strides = [1, 1, 1, 1]} : vector<8x2x8x4xf32> to vector<8x1x8x4xf32>
    %8 = vector.shape_cast %7 : vector<8x1x8x4xf32> to vector<8x8x4xf32>
    %9 = arith.maximumf %6, %8 : vector<8x8x4xf32>
    %cst = arith.constant 0.000000e+00 : f32
    %10 = vector.broadcast %cst : f32 to vector<1x8x4xf32>
    %11 = tpu.concatenate %10, %9, %10 in 0 : vector<1x8x4xf32>, vector<8x8x4xf32>, vector<1x8x4xf32> -> vector<10x8x4xf32>
    %cst_4 = arith.constant 0.000000e+00 : f32
    %12 = vector.broadcast %cst_4 : f32 to vector<10x1x4xf32>
    %13 = tpu.concatenate %12, %11, %12 in 1 : vector<10x1x4xf32>, vector<10x8x4xf32>, vector<10x1x4xf32> -> vector<10x10x4xf32>
    %14 = vector.extract_strided_slice %13 {offsets = [0, 0, 0], sizes = [10, 8, 4], strides = [1, 1, 1]} : vector<10x10x4xf32> to vector<10x8x4xf32>
    %15 = vector.extract_strided_slice %13 {offsets = [0, 1, 0], sizes = [10, 8, 4], strides = [1, 1, 1]} : vector<10x10x4xf32> to vector<10x8x4xf32>
    %16 = vector.extract_strided_slice %13 {offsets = [0, 2, 0], sizes = [10, 8, 4], strides = [1, 1, 1]} : vector<10x10x4xf32> to vector<10x8x4xf32>
    %17 = tpu.concatenate %14, %15, %16 in 2 : vector<10x8x4xf32>, vector<10x8x4xf32>, vector<10x8x4xf32> -> vector<10x8x12xf32>
    %18 = vector.shape_cast %17 : vector<10x8x12xf32> to vector<80x12xf32>
    %19 = vector.extract_strided_slice %18 {offsets = [0, 0], sizes = [64, 12], strides = [1, 1]} : vector<80x12xf32> to vector<64x12xf32>
    %c0_5 = arith.constant 0 : index
    %c0_6 = arith.constant 0 : index
    %c0_7 = arith.constant 0 : index
    %20 = vector.load %arg2[%c0_5, %c0_6, %c0_7] : memref<3x12x8xf32, #tpu.memory_space<vmem>>, vector<1x12x8xf32>
    %21 = vector.shape_cast %20 : vector<1x12x8xf32> to vector<12x8xf32>
    %cst_8 = arith.constant dense<0.000000e+00> : vector<64x8xf32>
    %22 = tpu.matmul %19, %21, %cst_8 {dimension_numbers = #tpu.dot_dimension_numbers<[1], [0], [0], [1], [0, 0, 1, 1], [], []>} : vector<64x12xf32>, vector<12x8xf32>, vector<64x8xf32> -> vector<64x8xf32>
    %c0_9 = arith.constant 0 : index
    %c0_10 = arith.constant 0 : index
    %23 = vector.load %arg6[%c0_9, %c0_10] : memref<64x8xf32, #tpu.memory_space<vmem>>, vector<64x8xf32>
    tpu.vector_store %arg6[%c0_9, %c0_10], %22 {strides = array<i32>} : memref<64x8xf32, #tpu.memory_space<vmem>>, vector<64x8xf32>,
    %24 = vector.extract_strided_slice %18 {offsets = [8, 0], sizes = [64, 12], strides = [1, 1]} : vector<80x12xf32> to vector<64x12xf32>
    %c1 = arith.constant 1 : index
    %c0_11 = arith.constant 0 : index
    %c0_12 = arith.constant 0 : index
    %25 = vector.load %arg2[%c1, %c0_11, %c0_12] : memref<3x12x8xf32, #tpu.memory_space<vmem>>, vector<1x12x8xf32>
    %26 = vector.shape_cast %25 : vector<1x12x8xf32> to vector<12x8xf32>
    %cst_13 = arith.constant dense<0.000000e+00> : vector<64x8xf32>
    %27 = tpu.matmul %24, %26, %cst_13 {dimension_numbers = #tpu.dot_dimension_numbers<[1], [0], [0], [1], [0, 0, 1, 1], [], []>} : vector<64x12xf32>, vector<12x8xf32>, vector<64x8xf32> -> vector<64x8xf32>
    %c0_14 = arith.constant 0 : index
    %c0_15 = arith.constant 0 : index
    %28 = vector.load %arg6[%c0_14, %c0_15] : memref<64x8xf32, #tpu.memory_space<vmem>>, vector<64x8xf32>
    %29 = arith.addf %28, %27 : vector<64x8xf32>
    %c0_16 = arith.constant 0 : index
    %c0_17 = arith.constant 0 : index
    %30 = vector.load %arg6[%c0_16, %c0_17] : memref<64x8xf32, #tpu.memory_space<vmem>>, vector<64x8xf32>
    tpu.vector_store %arg6[%c0_16, %c0_17], %29 {strides = array<i32>} : memref<64x8xf32, #tpu.memory_space<vmem>>, vector<64x8xf32>,
    %31 = vector.extract_strided_slice %18 {offsets = [16, 0], sizes = [64, 12], strides = [1, 1]} : vector<80x12xf32> to vector<64x12xf32>
    %c2 = arith.constant 2 : index
    %c0_18 = arith.constant 0 : index
    %c0_19 = arith.constant 0 : index
    %32 = vector.load %arg2[%c2, %c0_18, %c0_19] : memref<3x12x8xf32, #tpu.memory_space<vmem>>, vector<1x12x8xf32>
    %33 = vector.shape_cast %32 : vector<1x12x8xf32> to vector<12x8xf32>
    %cst_20 = arith.constant dense<0.000000e+00> : vector<64x8xf32>
    %34 = tpu.matmul %31, %33, %cst_20 {dimension_numbers = #tpu.dot_dimension_numbers<[1], [0], [0], [1], [0, 0, 1, 1], [], []>} : vector<64x12xf32>, vector<12x8xf32>, vector<64x8xf32> -> vector<64x8xf32>
    %c0_21 = arith.constant 0 : index
    %c0_22 = arith.constant 0 : index
    %35 = vector.load %arg6[%c0_21, %c0_22] : memref<64x8xf32, #tpu.memory_space<vmem>>, vector<64x8xf32>
    %36 = arith.addf %35, %34 : vector<64x8xf32>
    %c0_23 = arith.constant 0 : index
    %c0_24 = arith.constant 0 : index
    %37 = vector.load %arg6[%c0_23, %c0_24] : memref<64x8xf32, #tpu.memory_space<vmem>>, vector<64x8xf32>
    tpu.vector_store %arg6[%c0_23, %c0_24], %36 {strides = array<i32>} : memref<64x8xf32, #tpu.memory_space<vmem>>, vector<64x8xf32>,
    %c0_25 = arith.constant 0 : index
    %c0_26 = arith.constant 0 : index
    %38 = vector.load %arg6[%c0_25, %c0_26] : memref<64x8xf32, #tpu.memory_space<vmem>>, vector<64x8xf32>
    %39 = vector.shape_cast %38 : vector<64x8xf32> to vector<8x8x8xf32>
    %c0_27 = arith.constant 0 : index
    %c0_28 = arith.constant 0 : index
    %c0_29 = arith.constant 0 : index
    %c0_30 = arith.constant 0 : index
    %40 = vector.load %arg3[%c0_27, %c0_28, %c0_29, %c0_30] : memref<1x8x8x8xf32, #tpu.memory_space<vmem>>, vector<1x8x8x8xf32>
    %41 = vector.shape_cast %40 : vector<1x8x8x8xf32> to vector<8x8x8xf32>
    %42 = vector.shape_cast %39 : vector<8x8x8xf32> to vector<1x8x8x8xf32>
    tpu.vector_store %arg3[%c0_27, %c0_28, %c0_29, %c0_30], %42 {strides = array<i32>} : memref<1x8x8x8xf32, #tpu.memory_space<vmem>>, vector<1x8x8x8xf32>,
    %cst_31 = arith.constant dense<0.000000e+00> : vector<8xf32>
    %43 = vector.multi_reduction <add>, %38, %cst_31 [0] : vector<64x8xf32> to vector<8xf32>
    %44 = vector.shape_cast %43 : vector<8xf32> to vector<1x8xf32>
    %c0_32 = arith.constant 0 : index
    %c0_33 = arith.constant 0 : index
    %c0_34 = arith.constant 0 : index
    %45 = vector.load %arg4[%c0_32, %c0_33, %c0_34] : memref<1x1x8xf32, #tpu.memory_space<vmem>>, vector<1x1x8xf32>
    %46 = vector.shape_cast %45 : vector<1x1x8xf32> to vector<1x8xf32>
    %47 = vector.shape_cast %44 : vector<1x8xf32> to vector<1x1x8xf32>
    tpu.vector_store %arg4[%c0_32, %c0_33, %c0_34], %47 {strides = array<i32>} : memref<1x1x8xf32, #tpu.memory_space<vmem>>, vector<1x1x8xf32>,
    %48 = arith.mulf %38, %38 : vector<64x8xf32>
    %cst_35 = arith.constant dense<0.000000e+00> : vector<8xf32>
    %49 = vector.multi_reduction <add>, %48, %cst_35 [0] : vector<64x8xf32> to vector<8xf32>
    %50 = vector.shape_cast %49 : vector<8xf32> to vector<1x8xf32>
    %c0_36 = arith.constant 0 : index
    %c0_37 = arith.constant 0 : index
    %c0_38 = arith.constant 0 : index
    %51 = vector.load %arg5[%c0_36, %c0_37, %c0_38] : memref<1x1x8xf32, #tpu.memory_space<vmem>>, vector<1x1x8xf32>
    %52 = vector.shape_cast %51 : vector<1x1x8xf32> to vector<1x8xf32>
    %53 = vector.shape_cast %50 : vector<1x8xf32> to vector<1x1x8xf32>
    tpu.vector_store %arg5[%c0_36, %c0_37, %c0_38], %53 {strides = array<i32>} : memref<1x1x8xf32, #tpu.memory_space<vmem>>, vector<1x1x8xf32>,
    return
  }
  func.func @transform_0(%arg0: i32) -> (i32, i32, i32, i32, i32) {
    %c0_i32 = arith.constant 0 : i32
    %c0_i32_0 = arith.constant 0 : i32
    %c0_i32_1 = arith.constant 0 : i32
    %c0_i32_2 = arith.constant 0 : i32
    %c0_i32_3 = arith.constant 0 : i32
    return %arg0, %c0_i32, %c0_i32_0, %c0_i32_1, %c0_i32_2 : i32, i32, i32, i32, i32
  }
  func.func @transform_1(%arg0: i32) -> (i32, i32, i32) {
    %c0_i32 = arith.constant 0 : i32
    %c0_i32_0 = arith.constant 0 : i32
    %c0_i32_1 = arith.constant 0 : i32
    %c0_i32_2 = arith.constant 0 : i32
    return %c0_i32, %c0_i32_0, %c0_i32_1 : i32, i32, i32
  }
  func.func @transform_2(%arg0: i32) -> (i32, i32, i32, i32) {
    %c0_i32 = arith.constant 0 : i32
    %c0_i32_0 = arith.constant 0 : i32
    %c0_i32_1 = arith.constant 0 : i32
    %c0_i32_2 = arith.constant 0 : i32
    return %arg0, %c0_i32, %c0_i32_0, %c0_i32_1 : i32, i32, i32, i32
  }
  func.func @transform_3(%arg0: i32) -> (i32, i32, i32) {
    %c0_i32 = arith.constant 0 : i32
    %c0_i32_0 = arith.constant 0 : i32
    %c0_i32_1 = arith.constant 0 : i32
    return %arg0, %c0_i32, %c0_i32_0 : i32, i32, i32
  }
  func.func @transform_4(%arg0: i32) -> (i32, i32, i32) {
    %c0_i32 = arith.constant 0 : i32
    %c0_i32_0 = arith.constant 0 : i32
    %c0_i32_1 = arith.constant 0 : i32
    return %arg0, %c0_i32, %c0_i32_0 : i32, i32, i32
  }
}

module attributes {stable_mosaic.version = 11 : i64} {
  func.func @_affine_relu_nchw_kernel(%arg0: i32, %arg1: memref<1x64x8xf32, #tpu.memory_space<vmem>>, %arg2: memref<1x8xf32, #tpu.memory_space<vmem>>, %arg3: memref<1x8xf32, #tpu.memory_space<vmem>>, %arg4: memref<1x8x64xf32, #tpu.memory_space<vmem>>) attributes {dimension_semantics = [#tpu.dimension_semantics<parallel>], iteration_bounds = array<i64: 2>, scalar_prefetch = 0 : i64, scratch_operands = 0 : i64, tpu.core_type = #tpu.core_type<tc>, window_params = [{transform_indices = @transform_0, window_bounds = array<i64: 1, 64, 8>}, {pipeline_mode = #tpu.pipeline_mode<synchronous>, transform_indices = @transform_1, window_bounds = array<i64: 1, 8>}, {pipeline_mode = #tpu.pipeline_mode<synchronous>, transform_indices = @transform_2, window_bounds = array<i64: 1, 8>}, {transform_indices = @transform_3, window_bounds = array<i64: 1, 8, 64>}]} {
    %c0 = arith.constant 0 : index
    %c0_0 = arith.constant 0 : index
    %c0_1 = arith.constant 0 : index
    %0 = vector.load %arg1[%c0, %c0_0, %c0_1] : memref<1x64x8xf32, #tpu.memory_space<vmem>>, vector<1x64x8xf32>
    %1 = vector.shape_cast %0 : vector<1x64x8xf32> to vector<64x8xf32>
    %c0_2 = arith.constant 0 : index
    %c0_3 = arith.constant 0 : index
    %2 = vector.load %arg2[%c0_2, %c0_3] : memref<1x8xf32, #tpu.memory_space<vmem>>, vector<1x8xf32>
    %3 = vector.broadcast %2 : vector<1x8xf32> to vector<64x8xf32>
    %4 = arith.mulf %1, %3 : vector<64x8xf32>
    %c0_4 = arith.constant 0 : index
    %c0_5 = arith.constant 0 : index
    %5 = vector.load %arg3[%c0_4, %c0_5] : memref<1x8xf32, #tpu.memory_space<vmem>>, vector<1x8xf32>
    %6 = vector.broadcast %5 : vector<1x8xf32> to vector<64x8xf32>
    %7 = arith.addf %4, %6 : vector<64x8xf32>
    %cst = arith.constant 0.000000e+00 : f32
    %8 = vector.broadcast %cst : f32 to vector<64x8xf32>
    %9 = arith.maximumf %7, %8 : vector<64x8xf32>
    %10 = tpu.transpose %9, [1, 0] : vector<64x8xf32> -> vector<8x64xf32>
    %c0_6 = arith.constant 0 : index
    %c0_7 = arith.constant 0 : index
    %c0_8 = arith.constant 0 : index
    %11 = vector.load %arg4[%c0_6, %c0_7, %c0_8] : memref<1x8x64xf32, #tpu.memory_space<vmem>>, vector<1x8x64xf32>
    %12 = vector.shape_cast %11 : vector<1x8x64xf32> to vector<8x64xf32>
    %13 = vector.shape_cast %10 : vector<8x64xf32> to vector<1x8x64xf32>
    tpu.vector_store %arg4[%c0_6, %c0_7, %c0_8], %13 {strides = array<i32>} : memref<1x8x64xf32, #tpu.memory_space<vmem>>, vector<1x8x64xf32>,
    return
  }
  func.func @transform_0(%arg0: i32) -> (i32, i32, i32) {
    %c0_i32 = arith.constant 0 : i32
    %c0_i32_0 = arith.constant 0 : i32
    %c0_i32_1 = arith.constant 0 : i32
    return %arg0, %c0_i32, %c0_i32_0 : i32, i32, i32
  }
  func.func @transform_1(%arg0: i32) -> (i32, i32) {
    %c0_i32 = arith.constant 0 : i32
    %c0_i32_0 = arith.constant 0 : i32
    %c0_i32_1 = arith.constant 0 : i32
    return %c0_i32, %c0_i32_0 : i32, i32
  }
  func.func @transform_2(%arg0: i32) -> (i32, i32) {
    %c0_i32 = arith.constant 0 : i32
    %c0_i32_0 = arith.constant 0 : i32
    %c0_i32_1 = arith.constant 0 : i32
    return %c0_i32, %c0_i32_0 : i32, i32
  }
  func.func @transform_3(%arg0: i32) -> (i32, i32, i32) {
    %c0_i32 = arith.constant 0 : i32
    %c0_i32_0 = arith.constant 0 : i32
    %c0_i32_1 = arith.constant 0 : i32
    return %arg0, %c0_i32, %c0_i32_0 : i32, i32, i32
  }
}

module attributes {stable_mosaic.version = 11 : i64} {
  func.func @_bnrelu_conv_stats_kernel(%arg0: i32, %arg1: memref<1x8x8x8xf32, #tpu.memory_space<vmem>>, %arg2: memref<1x8xf32, #tpu.memory_space<vmem>>, %arg3: memref<1x8xf32, #tpu.memory_space<vmem>>, %arg4: memref<3x24x8xf32, #tpu.memory_space<vmem>>, %arg5: memref<1x64x8xf32, #tpu.memory_space<vmem>>, %arg6: memref<1x1x8xf32, #tpu.memory_space<vmem>>, %arg7: memref<1x1x8xf32, #tpu.memory_space<vmem>>, %arg8: memref<64x8xf32, #tpu.memory_space<vmem>>) attributes {dimension_semantics = [#tpu.dimension_semantics<parallel>], iteration_bounds = array<i64: 2>, scalar_prefetch = 0 : i64, scratch_operands = 1 : i64, tpu.core_type = #tpu.core_type<tc>, window_params = [{transform_indices = @transform_0, window_bounds = array<i64: 1, 8, 8, 8>}, {pipeline_mode = #tpu.pipeline_mode<synchronous>, transform_indices = @transform_1, window_bounds = array<i64: 1, 8>}, {pipeline_mode = #tpu.pipeline_mode<synchronous>, transform_indices = @transform_2, window_bounds = array<i64: 1, 8>}, {pipeline_mode = #tpu.pipeline_mode<synchronous>, transform_indices = @transform_3, window_bounds = array<i64: 3, 24, 8>}, {transform_indices = @transform_4, window_bounds = array<i64: 1, 64, 8>}, {transform_indices = @transform_5, window_bounds = array<i64: 1, 1, 8>}, {transform_indices = @transform_6, window_bounds = array<i64: 1, 1, 8>}]} {
    %c0 = arith.constant 0 : index
    %c0_0 = arith.constant 0 : index
    %c0_1 = arith.constant 0 : index
    %c0_2 = arith.constant 0 : index
    %0 = vector.load %arg1[%c0, %c0_0, %c0_1, %c0_2] : memref<1x8x8x8xf32, #tpu.memory_space<vmem>>, vector<1x8x8x8xf32>
    %1 = vector.shape_cast %0 : vector<1x8x8x8xf32> to vector<8x8x8xf32>
    %c0_3 = arith.constant 0 : index
    %c0_4 = arith.constant 0 : index
    %2 = vector.load %arg2[%c0_3, %c0_4] : memref<1x8xf32, #tpu.memory_space<vmem>>, vector<1x8xf32>
    %3 = vector.shape_cast %2 : vector<1x8xf32> to vector<1x1x8xf32>
    %4 = vector.broadcast %3 : vector<1x1x8xf32> to vector<8x8x8xf32>
    %5 = arith.mulf %1, %4 : vector<8x8x8xf32>
    %c0_5 = arith.constant 0 : index
    %c0_6 = arith.constant 0 : index
    %6 = vector.load %arg3[%c0_5, %c0_6] : memref<1x8xf32, #tpu.memory_space<vmem>>, vector<1x8xf32>
    %7 = vector.shape_cast %6 : vector<1x8xf32> to vector<1x1x8xf32>
    %8 = vector.broadcast %7 : vector<1x1x8xf32> to vector<8x8x8xf32>
    %9 = arith.addf %5, %8 : vector<8x8x8xf32>
    %cst = arith.constant 0.000000e+00 : f32
    %10 = vector.broadcast %cst : f32 to vector<8x8x8xf32>
    %11 = arith.maximumf %9, %10 : vector<8x8x8xf32>
    %cst_7 = arith.constant 0.000000e+00 : f32
    %12 = vector.broadcast %cst_7 : f32 to vector<1x8x8xf32>
    %13 = tpu.concatenate %12, %11, %12 in 0 : vector<1x8x8xf32>, vector<8x8x8xf32>, vector<1x8x8xf32> -> vector<10x8x8xf32>
    %cst_8 = arith.constant 0.000000e+00 : f32
    %14 = vector.broadcast %cst_8 : f32 to vector<10x1x8xf32>
    %15 = tpu.concatenate %14, %13, %14 in 1 : vector<10x1x8xf32>, vector<10x8x8xf32>, vector<10x1x8xf32> -> vector<10x10x8xf32>
    %16 = vector.extract_strided_slice %15 {offsets = [0, 0, 0], sizes = [10, 8, 8], strides = [1, 1, 1]} : vector<10x10x8xf32> to vector<10x8x8xf32>
    %17 = vector.extract_strided_slice %15 {offsets = [0, 1, 0], sizes = [10, 8, 8], strides = [1, 1, 1]} : vector<10x10x8xf32> to vector<10x8x8xf32>
    %18 = vector.extract_strided_slice %15 {offsets = [0, 2, 0], sizes = [10, 8, 8], strides = [1, 1, 1]} : vector<10x10x8xf32> to vector<10x8x8xf32>
    %19 = tpu.concatenate %16, %17, %18 in 2 : vector<10x8x8xf32>, vector<10x8x8xf32>, vector<10x8x8xf32> -> vector<10x8x24xf32>
    %20 = vector.shape_cast %19 : vector<10x8x24xf32> to vector<80x24xf32>
    %21 = vector.extract_strided_slice %20 {offsets = [0, 0], sizes = [64, 24], strides = [1, 1]} : vector<80x24xf32> to vector<64x24xf32>
    %c0_9 = arith.constant 0 : index
    %c0_10 = arith.constant 0 : index
    %c0_11 = arith.constant 0 : index
    %22 = vector.load %arg4[%c0_9, %c0_10, %c0_11] : memref<3x24x8xf32, #tpu.memory_space<vmem>>, vector<1x24x8xf32>
    %23 = vector.shape_cast %22 : vector<1x24x8xf32> to vector<24x8xf32>
    %cst_12 = arith.constant dense<0.000000e+00> : vector<64x8xf32>
    %24 = tpu.matmul %21, %23, %cst_12 {dimension_numbers = #tpu.dot_dimension_numbers<[1], [0], [0], [1], [0, 0, 1, 1], [], []>} : vector<64x24xf32>, vector<24x8xf32>, vector<64x8xf32> -> vector<64x8xf32>
    %c0_13 = arith.constant 0 : index
    %c0_14 = arith.constant 0 : index
    %25 = vector.load %arg8[%c0_13, %c0_14] : memref<64x8xf32, #tpu.memory_space<vmem>>, vector<64x8xf32>
    tpu.vector_store %arg8[%c0_13, %c0_14], %24 {strides = array<i32>} : memref<64x8xf32, #tpu.memory_space<vmem>>, vector<64x8xf32>,
    %26 = vector.extract_strided_slice %20 {offsets = [8, 0], sizes = [64, 24], strides = [1, 1]} : vector<80x24xf32> to vector<64x24xf32>
    %c1 = arith.constant 1 : index
    %c0_15 = arith.constant 0 : index
    %c0_16 = arith.constant 0 : index
    %27 = vector.load %arg4[%c1, %c0_15, %c0_16] : memref<3x24x8xf32, #tpu.memory_space<vmem>>, vector<1x24x8xf32>
    %28 = vector.shape_cast %27 : vector<1x24x8xf32> to vector<24x8xf32>
    %cst_17 = arith.constant dense<0.000000e+00> : vector<64x8xf32>
    %29 = tpu.matmul %26, %28, %cst_17 {dimension_numbers = #tpu.dot_dimension_numbers<[1], [0], [0], [1], [0, 0, 1, 1], [], []>} : vector<64x24xf32>, vector<24x8xf32>, vector<64x8xf32> -> vector<64x8xf32>
    %c0_18 = arith.constant 0 : index
    %c0_19 = arith.constant 0 : index
    %30 = vector.load %arg8[%c0_18, %c0_19] : memref<64x8xf32, #tpu.memory_space<vmem>>, vector<64x8xf32>
    %31 = arith.addf %30, %29 : vector<64x8xf32>
    %c0_20 = arith.constant 0 : index
    %c0_21 = arith.constant 0 : index
    %32 = vector.load %arg8[%c0_20, %c0_21] : memref<64x8xf32, #tpu.memory_space<vmem>>, vector<64x8xf32>
    tpu.vector_store %arg8[%c0_20, %c0_21], %31 {strides = array<i32>} : memref<64x8xf32, #tpu.memory_space<vmem>>, vector<64x8xf32>,
    %33 = vector.extract_strided_slice %20 {offsets = [16, 0], sizes = [64, 24], strides = [1, 1]} : vector<80x24xf32> to vector<64x24xf32>
    %c2 = arith.constant 2 : index
    %c0_22 = arith.constant 0 : index
    %c0_23 = arith.constant 0 : index
    %34 = vector.load %arg4[%c2, %c0_22, %c0_23] : memref<3x24x8xf32, #tpu.memory_space<vmem>>, vector<1x24x8xf32>
    %35 = vector.shape_cast %34 : vector<1x24x8xf32> to vector<24x8xf32>
    %cst_24 = arith.constant dense<0.000000e+00> : vector<64x8xf32>
    %36 = tpu.matmul %33, %35, %cst_24 {dimension_numbers = #tpu.dot_dimension_numbers<[1], [0], [0], [1], [0, 0, 1, 1], [], []>} : vector<64x24xf32>, vector<24x8xf32>, vector<64x8xf32> -> vector<64x8xf32>
    %c0_25 = arith.constant 0 : index
    %c0_26 = arith.constant 0 : index
    %37 = vector.load %arg8[%c0_25, %c0_26] : memref<64x8xf32, #tpu.memory_space<vmem>>, vector<64x8xf32>
    %38 = arith.addf %37, %36 : vector<64x8xf32>
    %c0_27 = arith.constant 0 : index
    %c0_28 = arith.constant 0 : index
    %39 = vector.load %arg8[%c0_27, %c0_28] : memref<64x8xf32, #tpu.memory_space<vmem>>, vector<64x8xf32>
    tpu.vector_store %arg8[%c0_27, %c0_28], %38 {strides = array<i32>} : memref<64x8xf32, #tpu.memory_space<vmem>>, vector<64x8xf32>,
    %c0_29 = arith.constant 0 : index
    %c0_30 = arith.constant 0 : index
    %40 = vector.load %arg8[%c0_29, %c0_30] : memref<64x8xf32, #tpu.memory_space<vmem>>, vector<64x8xf32>
    %c0_31 = arith.constant 0 : index
    %c0_32 = arith.constant 0 : index
    %c0_33 = arith.constant 0 : index
    %41 = vector.load %arg5[%c0_31, %c0_32, %c0_33] : memref<1x64x8xf32, #tpu.memory_space<vmem>>, vector<1x64x8xf32>
    %42 = vector.shape_cast %41 : vector<1x64x8xf32> to vector<64x8xf32>
    %43 = vector.shape_cast %40 : vector<64x8xf32> to vector<1x64x8xf32>
    tpu.vector_store %arg5[%c0_31, %c0_32, %c0_33], %43 {strides = array<i32>} : memref<1x64x8xf32, #tpu.memory_space<vmem>>, vector<1x64x8xf32>,
    %cst_34 = arith.constant dense<0.000000e+00> : vector<8xf32>
    %44 = vector.multi_reduction <add>, %40, %cst_34 [0] : vector<64x8xf32> to vector<8xf32>
    %45 = vector.shape_cast %44 : vector<8xf32> to vector<1x8xf32>
    %c0_35 = arith.constant 0 : index
    %c0_36 = arith.constant 0 : index
    %c0_37 = arith.constant 0 : index
    %46 = vector.load %arg6[%c0_35, %c0_36, %c0_37] : memref<1x1x8xf32, #tpu.memory_space<vmem>>, vector<1x1x8xf32>
    %47 = vector.shape_cast %46 : vector<1x1x8xf32> to vector<1x8xf32>
    %48 = vector.shape_cast %45 : vector<1x8xf32> to vector<1x1x8xf32>
    tpu.vector_store %arg6[%c0_35, %c0_36, %c0_37], %48 {strides = array<i32>} : memref<1x1x8xf32, #tpu.memory_space<vmem>>, vector<1x1x8xf32>,
    %49 = arith.mulf %40, %40 : vector<64x8xf32>
    %cst_38 = arith.constant dense<0.000000e+00> : vector<8xf32>
    %50 = vector.multi_reduction <add>, %49, %cst_38 [0] : vector<64x8xf32> to vector<8xf32>
    %51 = vector.shape_cast %50 : vector<8xf32> to vector<1x8xf32>
    %c0_39 = arith.constant 0 : index
    %c0_40 = arith.constant 0 : index
    %c0_41 = arith.constant 0 : index
    %52 = vector.load %arg7[%c0_39, %c0_40, %c0_41] : memref<1x1x8xf32, #tpu.memory_space<vmem>>, vector<1x1x8xf32>
    %53 = vector.shape_cast %52 : vector<1x1x8xf32> to vector<1x8xf32>
    %54 = vector.shape_cast %51 : vector<1x8xf32> to vector<1x1x8xf32>
    tpu.vector_store %arg7[%c0_39, %c0_40, %c0_41], %54 {strides = array<i32>} : memref<1x1x8xf32, #tpu.memory_space<vmem>>, vector<1x1x8xf32>,
    return
  }
  func.func @transform_0(%arg0: i32) -> (i32, i32, i32, i32) {
    %c0_i32 = arith.constant 0 : i32
    %c0_i32_0 = arith.constant 0 : i32
    %c0_i32_1 = arith.constant 0 : i32
    %c0_i32_2 = arith.constant 0 : i32
    return %arg0, %c0_i32, %c0_i32_0, %c0_i32_1 : i32, i32, i32, i32
  }
  func.func @transform_1(%arg0: i32) -> (i32, i32) {
    %c0_i32 = arith.constant 0 : i32
    %c0_i32_0 = arith.constant 0 : i32
    %c0_i32_1 = arith.constant 0 : i32
    return %c0_i32, %c0_i32_0 : i32, i32
  }
  func.func @transform_2(%arg0: i32) -> (i32, i32) {
    %c0_i32 = arith.constant 0 : i32
    %c0_i32_0 = arith.constant 0 : i32
    %c0_i32_1 = arith.constant 0 : i32
    return %c0_i32, %c0_i32_0 : i32, i32
  }
  func.func @transform_3(%arg0: i32) -> (i32, i32, i32) {
    %c0_i32 = arith.constant 0 : i32
    %c0_i32_0 = arith.constant 0 : i32
    %c0_i32_1 = arith.constant 0 : i32
    %c0_i32_2 = arith.constant 0 : i32
    return %c0_i32, %c0_i32_0, %c0_i32_1 : i32, i32, i32
  }
  func.func @transform_4(%arg0: i32) -> (i32, i32, i32) {
    %c0_i32 = arith.constant 0 : i32
    %c0_i32_0 = arith.constant 0 : i32
    %c0_i32_1 = arith.constant 0 : i32
    return %arg0, %c0_i32, %c0_i32_0 : i32, i32, i32
  }
  func.func @transform_5(%arg0: i32) -> (i32, i32, i32) {
    %c0_i32 = arith.constant 0 : i32
    %c0_i32_0 = arith.constant 0 : i32
    %c0_i32_1 = arith.constant 0 : i32
    return %arg0, %c0_i32, %c0_i32_0 : i32, i32, i32
  }
  func.func @transform_6(%arg0: i32) -> (i32, i32, i32) {
    %c0_i32 = arith.constant 0 : i32
    %c0_i32_0 = arith.constant 0 : i32
    %c0_i32_1 = arith.constant 0 : i32
    return %arg0, %c0_i32, %c0_i32_0 : i32, i32, i32
  }
}

</mosaic_0001>

<llo_original>
// kernel: encoder_block_forward.5
$region0: #{encoder_block_forward.5}
  #allocation0 [shape = 'u32[]', space=smem, size = 0x4, offset = 0x4, fixed_abs, tag = 'smem constant byte address 0x4 - core index']
  #allocation1 [shape = 'u32[144,128]{1,0:T(1,128)}', space=vmem, size = 0x12000, scoped, tag = 'internal scratch']
  %s0 = inlined_call_operand.vmem [shape: f32[2,64,8], index: 0, kind: input, shape index: {}]
  %s1 = inlined_call_operand.vmem [shape: f32[1,8], index: 1, kind: input, shape index: {}]
  %s2 = inlined_call_operand.vmem [shape: f32[1,8], index: 2, kind: input, shape index: {}]
  %s3 = inlined_call_operand.vmem [shape: f32[2,8,64], index: 3, kind: output, shape index: {}]
  %s4 = sld [smem:[#allocation0]]
  $region45: #{encoder_block_forward.5} parent=0
    _
  %s6 = ssub.s32 1, %s4
  %s7 = scalar_select 0, %s6, %s4
  loop: start=0, step=1, limit=4
  $region2: #{encoder_block_forward.5} parent=0 // loop_pre_header
    _
  $region3: #{encoder_block_forward.5} parent=0 // loop_header
    %s9 = sphi 0, %s13
    %p10 = scmp.ge.s32.totalorder %s9, 4
    %s19 = sphi 0, %s21
    %s22 = sphi 0, %s19
    %s23 = sphi 0, %s22
    %s39 = sphi 0, %s23
    %s43 = sphi 0, %s43
    %s45 = sphi 0, %s43
    %s46 = sphi 0, %s45
    %s60 = sphi 0, %s46
    %s64 = sphi 0, %s64
    %s66 = sphi 0, %s64
    %s67 = sphi 0, %s66
    %s81 = sphi 0, %s67
    %s87 = sphi 0, %s89
    %s90 = sphi 0, %s87
    %s91 = sphi 0, %s90
    %s107 = sphi 0, %s91
  $region4: #{encoder_block_forward.5} parent=0 // loop_header_branch
    %12 = sbr.rel (%p10) target = $region8
  $region5: #{encoder_block_forward.5} parent=0 // loop_body
    %s14 = ssub.s32 %s9, 1
    %s15 = ssub.s32 %s9, 2
    %s16 = sadd.s32 %s9, 1
    %s17 = ssub.s32 %s9, %s16
    %p18 = scmp.eq.s32.totalorder %s17, 0
    %s20 = sadd.s32 %s19, 1
    %s21 = scalar_select %p18, %s19, %s20
    %p24 = pneg %p18
    %p25 = scmp.eq.s32.totalorder %s9, 1
    %p26 = por %p24, %p25
    %p27 = scmp.ne.s32.totalorder %s19, %s22
    %p28 = scmp.eq.s32.totalorder %s9, 0
    %p29 = por %p27, %p28
    %p30 = scmp.ne.s32.totalorder %s19, %s22
    %p31 = scmp.eq.s32.totalorder %s14, 1
    %p32 = por %p30, %p31
    %p33 = scmp.ne.s32.totalorder %s22, %s23
    %p34 = scmp.eq.s32.totalorder %s14, 0
    %p35 = por %p33, %p34
    %p36 = scmp.ne.s32.totalorder %s22, %s23
    %p37 = scmp.eq.s32.totalorder %s15, 1
    %p38 = por %p36, %p37
    %p40 = scmp.ne.s32.totalorder %s23, %s39
    %p41 = scmp.eq.s32.totalorder %s15, 0
    %p42 = por %p40, %p41
    %s44 = sadd.s32 %s43, 1
    %p47 = scmp.eq.s32.totalorder %s9, 1
    %p48 = scmp.ne.s32.totalorder %s43, %s45
    %p49 = scmp.eq.s32.totalorder %s9, 0
    %p50 = por %p48, %p49
    %p51 = scmp.ne.s32.totalorder %s43, %s45
    %p52 = scmp.eq.s32.totalorder %s14, 1
    %p53 = por %p51, %p52
    %p54 = scmp.ne.s32.totalorder %s45, %s46
    %p55 = scmp.eq.s32.totalorder %s14, 0
    %p56 = por %p54, %p55
    %p57 = scmp.ne.s32.totalorder %s45, %s46
    %p58 = scmp.eq.s32.totalorder %s15, 1
    %p59 = por %p57, %p58
    %p61 = scmp.ne.s32.totalorder %s46, %s60
    %p62 = scmp.eq.s32.totalorder %s15, 0
    %p63 = por %p61, %p62
    %s65 = sadd.s32 %s64, 1
    %p68 = scmp.eq.s32.totalorder %s9, 1
    %p69 = scmp.ne.s32.totalorder %s64, %s66
    %p70 = scmp.eq.s32.totalorder %s9, 0
    %p71 = por %p69, %p70
    %p72 = scmp.ne.s32.totalorder %s64, %s66
    %p73 = scmp.eq.s32.totalorder %s14, 1
    %p74 = por %p72, %p73
    %p75 = scmp.ne.s32.totalorder %s66, %s67
    %p76 = scmp.eq.s32.totalorder %s14, 0
    %p77 = por %p75, %p76
    %p78 = scmp.ne.s32.totalorder %s66, %s67
    %p79 = scmp.eq.s32.totalorder %s15, 1
    %p80 = por %p78, %p79
    %p82 = scmp.ne.s32.totalorder %s67, %s81
    %p83 = scmp.eq.s32.totalorder %s15, 0
    %p84 = por %p82, %p83
    %s85 = ssub.s32 %s9, %s16
    %p86 = scmp.eq.s32.totalorder %s85, 0
    %s88 = sadd.s32 %s87, 1
    %s89 = scalar_select %p86, %s87, %s88
    %p92 = pneg %p86
    %p93 = scmp.eq.s32.totalorder %s9, 1
    %p94 = por %p92, %p93
    %p95 = scmp.ne.s32.totalorder %s87, %s90
    %p96 = scmp.eq.s32.totalorder %s9, 0
    %p97 = por %p95, %p96
    %p98 = scmp.ne.s32.totalorder %s87, %s90
    %p99 = scmp.eq.s32.totalorder %s14, 1
    %p100 = por %p98, %p99
    %p101 = scmp.ne.s32.totalorder %s90, %s91
    %p102 = scmp.eq.s32.totalorder %s14, 0
    %p103 = por %p101, %p102
    %p104 = scmp.ne.s32.totalorder %s90, %s91
    %p105 = scmp.eq.s32.totalorder %s15, 1
    %p106 = por %p104, %p105
    %p108 = scmp.ne.s32.totalorder %s91, %s107
    %p109 = scmp.eq.s32.totalorder %s15, 0
    %p110 = por %p108, %p109
    %p111 = scmp.le.s32.totalorder 1, %s9
    %p112 = scmp.lt.s32.totalorder %s9, 3
    %p113 = pnand %p111, %p112
    %p114 = pneg %p113
    // Predicated region
    $region9: #{encoder_block_forward.5} parent=5 // pred_check
      _
    $region10: #{encoder_block_forward.5} parent=5 // pred_check_branch
      %116 = sbr.rel (%p113) target = $region12
    $region11: #{encoder_block_forward.5} parent=5 // pred_region
      %s117 = ssub.s32 %s9, 1
      // Predicated region
      $region13: #{encoder_block_forward.5} parent=11 // pred_check
        %p118 = pneg %p56
      $region14: #{encoder_block_forward.5} parent=11 // pred_check_branch
        %120 = sbr.rel (%p118) target = $region16
      $region15: #{encoder_block_forward.5} parent=11 // pred_region
        _
      $region16: #{encoder_block_forward.5} parent=11 // pred_fallthru
        _
      // Predicated region
      $region17: #{encoder_block_forward.5} parent=11 // pred_check
        %p121 = pneg %p77
      $region18: #{encoder_block_forward.5} parent=11 // pred_check_branch
        %123 = sbr.rel (%p121) target = $region20
      $region19: #{encoder_block_forward.5} parent=11 // pred_region
        _
      $region20: #{encoder_block_forward.5} parent=11 // pred_fallthru
        _
    $region12: #{encoder_block_forward.5} parent=5 // pred_fallthru
      _
    %p124 = scmp.lt.s32.totalorder %s9, 2
    // Predicated region
    $region21: #{encoder_block_forward.5} parent=5 // pred_check
      %p125 = pneg %p124
    $region22: #{encoder_block_forward.5} parent=5 // pred_check_branch
      %127 = sbr.rel (%p125) target = $region24
    $region23: #{encoder_block_forward.5} parent=5 // pred_region
      // Predicated region
      $region25: #{encoder_block_forward.5} parent=23 // pred_check
        %p128 = pneg %p29
      $region26: #{encoder_block_forward.5} parent=23 // pred_check_branch
        %130 = sbr.rel (%p128) target = $region28
      $region27: #{encoder_block_forward.5} parent=23 // pred_region
        %p131 = scmp.lt.s32.totalorder %s9, 1
        %s132 = scalar_select %p131, %s9, 1
        %s133 = smul.addr %s132, 8
        %s134 = smul.addr %s133, 8
        %s135 = scalar_lea.vmem %s0, %s134
      $region28: #{encoder_block_forward.5} parent=23 // pred_fallthru
        _
    $region24: #{encoder_block_forward.5} parent=5 // pred_fallthru
      _
    %p136 = scmp.le.s32.totalorder 1, %s9
    %p137 = scmp.lt.s32.totalorder %s9, 3
    %p138 = pnand %p136, %p137
    %p139 = pneg %p138
    // Predicated region
    $region29: #{encoder_block_forward.5} parent=5 // pred_check
      _
    $region30: #{encoder_block_forward.5} parent=5 // pred_check_branch
      %141 = sbr.rel (%p138) target = $region32
    $region31: #{encoder_block_forward.5} parent=5 // pred_region
      %s142 = ssub.s32 %s9, 1
      %p143 = scmp.lt.s32.totalorder %s14, 1
      %s144 = scalar_select %p143, %s14, 1
      %s145 = smul.addr %s144, 8
      %s146 = smul.addr %s145, 8
      %s147 = scalar_lea.vmem %s0, %s146
      %p148 = pneg %p35
      %p149 = pneg %p32
      %p150 = pneg %p56
      %p151 = pneg %p53
      %p152 = pneg %p77
      %p153 = pneg %p74
      %p154 = pneg %p103
      %p155 = pneg %p100
      %p156 = scmp.lt.s32.totalorder %s14, 1
      %s157 = scalar_select %p156, %s14, 1
      %s158 = smul.addr %s157, 8
      %s159 = scalar_lea.vmem %s3, %s158
      %p160 = scmp.lt.s32.totalorder %s14, 1
      %s161 = scalar_select %p160, %s14, 1
      %s162 = smul.addr %s161, 8
      %s163 = smul.addr %s162, 8
      %s164 = scalar_lea.vmem %s0, %s163
      %p165 = scmp.lt.s32.totalorder %s14, 1
      %s166 = scalar_select %p165, %s14, 1
      %s167 = smul.addr %s166, 8
      %s168 = scalar_lea.vmem %s3, %s167
      %v169 = vld [vmem:[%s164] sm:$0xff]
      %v170 = vld [vmem:[%s164 + $0x8] sm:$0xff]
      %v171 = vld [vmem:[%s164 + $0x10] sm:$0xff]
      %v172 = vld [vmem:[%s164 + $0x18] sm:$0xff]
      %v173 = vld [vmem:[%s164 + $0x20] sm:$0xff]
      %v174 = vld [vmem:[%s164 + $0x28] sm:$0xff]
      %v175 = vld [vmem:[%s164 + $0x30] sm:$0xff]
      %v176 = vld [vmem:[%s164 + $0x38] sm:$0xff]
      %v177 = vld [vmem:[%s1] sm:$0x1]
      %v179 = vlaneseq
      %v180 = vshrl.u32 %v179, 7
      %v181 = vsub.s32 0, %v180
      %v182 = vrot.slane %v177, %v181
      %v184 = vmul.f32 %v169, %v182
      %v185 = vmul.f32 %v170, %v182
      %v186 = vmul.f32 %v171, %v182
      %v187 = vmul.f32 %v172, %v182
      %v188 = vmul.f32 %v173, %v182
      %v189 = vmul.f32 %v174, %v182
      %v190 = vmul.f32 %v175, %v182
      %v191 = vmul.f32 %v176, %v182
      %v192 = vld [vmem:[%s2] sm:$0x1]
      %v194 = vlaneseq
      %v195 = vshrl.u32 %v194, 7
      %v196 = vsub.s32 0, %v195
      %v197 = vrot.slane %v192, %v196
      %v199 = vadd.f32 %v184, %v197
      %v200 = vadd.f32 %v185, %v197
      %v201 = vadd.f32 %v186, %v197
      %v202 = vadd.f32 %v187, %v197
      %v203 = vadd.f32 %v188, %v197
      %v204 = vadd.f32 %v189, %v197
      %v205 = vadd.f32 %v190, %v197
      %v206 = vadd.f32 %v191, %v197
      %v207 = vmax.f32 %v199, 0.0
      %v208 = vmax.f32 %v200, 0.0
      %v209 = vmax.f32 %v201, 0.0
      %v210 = vmax.f32 %v202, 0.0
      %v211 = vmax.f32 %v203, 0.0
      %v212 = vmax.f32 %v204, 0.0
      %v213 = vmax.f32 %v205, 0.0
      %v214 = vmax.f32 %v206, 0.0
      %215 = vxpose.xlu0.b32.start [1/16] %v207, 128
      %216 = vxpose.xlu0.b32.cont [2/16] %v208, 128
      %217 = vxpose.xlu0.b32.cont [3/16] %v209, 128
      %218 = vxpose.xlu0.b32.cont [4/16] %v210, 128
      %219 = vxpose.xlu0.b32.cont [5/16] %v211, 128
      %220 = vxpose.xlu0.b32.cont [6/16] %v212, 128
      %221 = vxpose.xlu0.b32.cont [7/16] %v213, 128
      %222 = vxpose.xlu0.b32.cont [8/16] %v214, 128
      %223 = vxpose.xlu0.b32.cont [9/16] 0.0, 128
      %224 = vxpose.xlu0.b32.cont [10/16] 0.0, 128
      %225 = vxpose.xlu0.b32.cont [11/16] 0.0, 128
      %226 = vxpose.xlu0.b32.cont [12/16] 0.0, 128
      %227 = vxpose.xlu0.b32.cont [13/16] 0.0, 128
      %228 = vxpose.xlu0.b32.cont [14/16] 0.0, 128
      %229 = vxpose.xlu0.b32.cont [15/16] 0.0, 128
      %230 = vxpose.xlu0.b32.end [16/16] 0.0, 128
      %v231 = vpop.trf.xlu0
      %v232 = vpop.trf.xlu0
      %v233 = vpop.trf.xlu0
      %v234 = vpop.trf.xlu0
      %v235 = vpop.trf.xlu0
      %v236 = vpop.trf.xlu0
      %v237 = vpop.trf.xlu0
      %v238 = vpop.trf.xlu0
      %v239 = vpop.trf.xlu0
      %v240 = vpop.trf.xlu0
      %v241 = vpop.trf.xlu0
      %v242 = vpop.trf.xlu0
      %v243 = vpop.trf.xlu0
      %v244 = vpop.trf.xlu0
      %v245 = vpop.trf.xlu0
      %v246 = vpop.trf.xlu0
      %vm247 = vcmask 523264
      %248 = vst.msk [vmem:[%s168] sm:$0xff] %vm247, %v231
      %p249 = scmp.lt.s32.totalorder %s14, 1
      %s250 = scalar_select %p249, %s14, 1
      %s251 = smul.addr %s250, 8
      %s252 = scalar_lea.vmem %s3, %s251
      // Predicated region
      $region33: #{encoder_block_forward.5} parent=31 // pred_check
        %p253 = pneg %p100
      $region34: #{encoder_block_forward.5} parent=31 // pred_check_branch
        %255 = sbr.rel (%p253) target = $region36
      $region35: #{encoder_block_forward.5} parent=31 // pred_region
        _
      $region36: #{encoder_block_forward.5} parent=31 // pred_fallthru
        _
    $region32: #{encoder_block_forward.5} parent=5 // pred_fallthru
      _
    %p256 = scmp.le.s32.totalorder 2, %s9
    // Predicated region
    $region37: #{encoder_block_forward.5} parent=5 // pred_check
      %p257 = pneg %p256
    $region38: #{encoder_block_forward.5} parent=5 // pred_check_branch
      %259 = sbr.rel (%p257) target = $region40
    $region39: #{encoder_block_forward.5} parent=5 // pred_region
      %s260 = ssub.s32 %s9, 2
      // Predicated region
      $region41: #{encoder_block_forward.5} parent=39 // pred_check
        %p261 = pneg %p106
      $region42: #{encoder_block_forward.5} parent=39 // pred_check_branch
        %263 = sbr.rel (%p261) target = $region44
      $region43: #{encoder_block_forward.5} parent=39 // pred_region
        %p264 = scmp.lt.s32.totalorder %s15, 1
        %s265 = scalar_select %p264, %s15, 1
        %s266 = smul.addr %s265, 8
        %s267 = scalar_lea.vmem %s3, %s266
      $region44: #{encoder_block_forward.5} parent=39 // pred_fallthru
        _
    $region40: #{encoder_block_forward.5} parent=5 // pred_fallthru
      _
  $region6: #{encoder_block_forward.5} parent=0 // loop_footer
    %s13 = sadd.s32 1, %s9
  $region7: #{encoder_block_forward.5} parent=0 // loop_footer_branch
    %8 = sbr.rel target = $region3
  $region8: #{encoder_block_forward.5} parent=0 // loop_exit
    _

// kernel: encoder_block_forward.3
$region0: #{encoder_block_forward.3}
  #allocation0 [shape = 'u32[]', space=smem, size = 0x4, offset = 0x4, fixed_abs, tag = 'smem constant byte address 0x4 - core index']
  #allocation1 [shape = 'u32[144,128]{1,0:T(1,128)}', space=vmem, size = 0x12000, scoped, tag = 'internal scratch']
  #allocation2 [shape = 'f32[64,8]{1,0:T(8,128)}', space=vmem, size = 0x8000, scoped, tag = 'scratch operand']
  %s0 = inlined_call_operand.vmem [shape: f32[2,8,2,8,8], index: 0, kind: input, shape index: {}]
  %s1 = inlined_call_operand.vmem [shape: f32[3,12,8], index: 1, kind: input, shape index: {}]
  %s2 = inlined_call_operand.vmem [shape: f32[2,8,8,8], index: 2, kind: output, shape index: {0}]
  %s3 = inlined_call_operand.vmem [shape: f32[2,1,8], index: 3, kind: output, shape index: {1}]
  %s4 = inlined_call_operand.vmem [shape: f32[2,1,8], index: 4, kind: output, shape index: {2}]
  %5 = xla_tuple %s2, %s3, %s4
  %s6 = sld [smem:[#allocation0]]
  $region57: #{encoder_block_forward.3} parent=0
    _
  %s8 = ssub.s32 1, %s6
  %s9 = scalar_select 0, %s8, %s6
  loop: start=0, step=1, limit=4
  $region2: #{encoder_block_forward.3} parent=0 // loop_pre_header
    _
  $region3: #{encoder_block_forward.3} parent=0 // loop_header
    %s11 = sphi 0, %s15
    %p12 = scmp.ge.s32.totalorder %s11, 4
    %s21 = sphi 0, %s23
    %s24 = sphi 0, %s21
    %s25 = sphi 0, %s24
    %s41 = sphi 0, %s25
    %s45 = sphi 0, %s45
    %s47 = sphi 0, %s45
    %s48 = sphi 0, %s47
    %s62 = sphi 0, %s48
    %s68 = sphi 0, %s70
    %s71 = sphi 0, %s68
    %s72 = sphi 0, %s71
    %s88 = sphi 0, %s72
    %s94 = sphi 0, %s96
    %s97 = sphi 0, %s94
    %s98 = sphi 0, %s97
    %s114 = sphi 0, %s98
    %s120 = sphi 0, %s122
    %s123 = sphi 0, %s120
    %s124 = sphi 0, %s123
    %s140 = sphi 0, %s124
  $region4: #{encoder_block_forward.3} parent=0 // loop_header_branch
    %14 = sbr.rel (%p12) target = $region8
  $region5: #{encoder_block_forward.3} parent=0 // loop_body
    %s16 = ssub.s32 %s11, 1
    %s17 = ssub.s32 %s11, 2
    %s18 = sadd.s32 %s11, 1
    %s19 = ssub.s32 %s11, %s18
    %p20 = scmp.eq.s32.totalorder %s19, 0
    %s22 = sadd.s32 %s21, 1
    %s23 = scalar_select %p20, %s21, %s22
    %p26 = pneg %p20
    %p27 = scmp.eq.s32.totalorder %s11, 1
    %p28 = por %p26, %p27
    %p29 = scmp.ne.s32.totalorder %s21, %s24
    %p30 = scmp.eq.s32.totalorder %s11, 0
    %p31 = por %p29, %p30
    %p32 = scmp.ne.s32.totalorder %s21, %s24
    %p33 = scmp.eq.s32.totalorder %s16, 1
    %p34 = por %p32, %p33
    %p35 = scmp.ne.s32.totalorder %s24, %s25
    %p36 = scmp.eq.s32.totalorder %s16, 0
    %p37 = por %p35, %p36
    %p38 = scmp.ne.s32.totalorder %s24, %s25
    %p39 = scmp.eq.s32.totalorder %s17, 1
    %p40 = por %p38, %p39
    %p42 = scmp.ne.s32.totalorder %s25, %s41
    %p43 = scmp.eq.s32.totalorder %s17, 0
    %p44 = por %p42, %p43
    %s46 = sadd.s32 %s45, 1
    %p49 = scmp.eq.s32.totalorder %s11, 1
    %p50 = scmp.ne.s32.totalorder %s45, %s47
    %p51 = scmp.eq.s32.totalorder %s11, 0
    %p52 = por %p50, %p51
    %p53 = scmp.ne.s32.totalorder %s45, %s47
    %p54 = scmp.eq.s32.totalorder %s16, 1
    %p55 = por %p53, %p54
    %p56 = scmp.ne.s32.totalorder %s47, %s48
    %p57 = scmp.eq.s32.totalorder %s16, 0
    %p58 = por %p56, %p57
    %p59 = scmp.ne.s32.totalorder %s47, %s48
    %p60 = scmp.eq.s32.totalorder %s17, 1
    %p61 = por %p59, %p60
    %p63 = scmp.ne.s32.totalorder %s48, %s62
    %p64 = scmp.eq.s32.totalorder %s17, 0
    %p65 = por %p63, %p64
    %s66 = ssub.s32 %s11, %s18
    %p67 = scmp.eq.s32.totalorder %s66, 0
    %s69 = sadd.s32 %s68, 1
    %s70 = scalar_select %p67, %s68, %s69
    %p73 = pneg %p67
    %p74 = scmp.eq.s32.totalorder %s11, 1
    %p75 = por %p73, %p74
    %p76 = scmp.ne.s32.totalorder %s68, %s71
    %p77 = scmp.eq.s32.totalorder %s11, 0
    %p78 = por %p76, %p77
    %p79 = scmp.ne.s32.totalorder %s68, %s71
    %p80 = scmp.eq.s32.totalorder %s16, 1
    %p81 = por %p79, %p80
    %p82 = scmp.ne.s32.totalorder %s71, %s72
    %p83 = scmp.eq.s32.totalorder %s16, 0
    %p84 = por %p82, %p83
    %p85 = scmp.ne.s32.totalorder %s71, %s72
    %p86 = scmp.eq.s32.totalorder %s17, 1
    %p87 = por %p85, %p86
    %p89 = scmp.ne.s32.totalorder %s72, %s88
    %p90 = scmp.eq.s32.totalorder %s17, 0
    %p91 = por %p89, %p90
    %s92 = ssub.s32 %s11, %s18
    %p93 = scmp.eq.s32.totalorder %s92, 0
    %s95 = sadd.s32 %s94, 1
    %s96 = scalar_select %p93, %s94, %s95
    %p99 = pneg %p93
    %p100 = scmp.eq.s32.totalorder %s11, 1
    %p101 = por %p99, %p100
    %p102 = scmp.ne.s32.totalorder %s94, %s97
    %p103 = scmp.eq.s32.totalorder %s11, 0
    %p104 = por %p102, %p103
    %p105 = scmp.ne.s32.totalorder %s94, %s97
    %p106 = scmp.eq.s32.totalorder %s16, 1
    %p107 = por %p105, %p106
    %p108 = scmp.ne.s32.totalorder %s97, %s98
    %p109 = scmp.eq.s32.totalorder %s16, 0
    %p110 = por %p108, %p109
    %p111 = scmp.ne.s32.totalorder %s97, %s98
    %p112 = scmp.eq.s32.totalorder %s17, 1
    %p113 = por %p111, %p112
    %p115 = scmp.ne.s32.totalorder %s98, %s114
    %p116 = scmp.eq.s32.totalorder %s17, 0
    %p117 = por %p115, %p116
    %s118 = ssub.s32 %s11, %s18
    %p119 = scmp.eq.s32.totalorder %s118, 0
    %s121 = sadd.s32 %s120, 1
    %s122 = scalar_select %p119, %s120, %s121
    %p125 = pneg %p119
    %p126 = scmp.eq.s32.totalorder %s11, 1
    %p127 = por %p125, %p126
    %p128 = scmp.ne.s32.totalorder %s120, %s123
    %p129 = scmp.eq.s32.totalorder %s11, 0
    %p130 = por %p128, %p129
    %p131 = scmp.ne.s32.totalorder %s120, %s123
    %p132 = scmp.eq.s32.totalorder %s16, 1
    %p133 = por %p131, %p132
    %p134 = scmp.ne.s32.totalorder %s123, %s124
    %p135 = scmp.eq.s32.totalorder %s16, 0
    %p136 = por %p134, %p135
    %p137 = scmp.ne.s32.totalorder %s123, %s124
    %p138 = scmp.eq.s32.totalorder %s17, 1
    %p139 = por %p137, %p138
    %p141 = scmp.ne.s32.totalorder %s124, %s140
    %p142 = scmp.eq.s32.totalorder %s17, 0
    %p143 = por %p141, %p142
    %p144 = scmp.le.s32.totalorder 1, %s11
    %p145 = scmp.lt.s32.totalorder %s11, 3
    %p146 = pnand %p144, %p145
    %p147 = pneg %p146
    // Predicated region
    $region9: #{encoder_block_forward.3} parent=5 // pred_check
      _
    $region10: #{encoder_block_forward.3} parent=5 // pred_check_branch
      %149 = sbr.rel (%p146) target = $region12
    $region11: #{encoder_block_forward.3} parent=5 // pred_region
      %s150 = ssub.s32 %s11, 1
      // Predicated region
      $region13: #{encoder_block_forward.3} parent=11 // pred_check
        %p151 = pneg %p58
      $region14: #{encoder_block_forward.3} parent=11 // pred_check_branch
        %153 = sbr.rel (%p151) target = $region16
      $region15: #{encoder_block_forward.3} parent=11 // pred_region
        _
      $region16: #{encoder_block_forward.3} parent=11 // pred_fallthru
        _
    $region12: #{encoder_block_forward.3} parent=5 // pred_fallthru
      _
    %p154 = scmp.lt.s32.totalorder %s11, 2
    // Predicated region
    $region17: #{encoder_block_forward.3} parent=5 // pred_check
      %p155 = pneg %p154
    $region18: #{encoder_block_forward.3} parent=5 // pred_check_branch
      %157 = sbr.rel (%p155) target = $region20
    $region19: #{encoder_block_forward.3} parent=5 // pred_region
      // Predicated region
      $region21: #{encoder_block_forward.3} parent=19 // pred_check
        %p158 = pneg %p31
      $region22: #{encoder_block_forward.3} parent=19 // pred_check_branch
        %160 = sbr.rel (%p158) target = $region24
      $region23: #{encoder_block_forward.3} parent=19 // pred_region
        %p161 = scmp.lt.s32.totalorder %s11, 1
        %s162 = scalar_select %p161, %s11, 1
        %s163 = smul.addr %s162, 16
        %s164 = smul.addr %s163, 8
        %s165 = scalar_lea.vmem %s0, %s164
      $region24: #{encoder_block_forward.3} parent=19 // pred_fallthru
        _
    $region20: #{encoder_block_forward.3} parent=5 // pred_fallthru
      _
    %p166 = scmp.le.s32.totalorder 1, %s11
    %p167 = scmp.lt.s32.totalorder %s11, 3
    %p168 = pnand %p166, %p167
    %p169 = pneg %p168
    // Predicated region
    $region25: #{encoder_block_forward.3} parent=5 // pred_check
      _
    $region26: #{encoder_block_forward.3} parent=5 // pred_check_branch
      %171 = sbr.rel (%p168) target = $region28
    $region27: #{encoder_block_forward.3} parent=5 // pred_region
      %s172 = ssub.s32 %s11, 1
      %p173 = scmp.lt.s32.totalorder %s16, 1
      %s174 = scalar_select %p173, %s16, 1
      %s175 = smul.addr %s174, 16
      %s176 = smul.addr %s175, 8
      %s177 = scalar_lea.vmem %s0, %s176
      %p178 = pneg %p37
      %p179 = pneg %p34
      %p180 = pneg %p58
      %p181 = pneg %p55
      %p182 = pneg %p84
      %p183 = pneg %p81
      %p184 = scmp.lt.s32.totalorder %s16, 1
      %s185 = scalar_select %p184, %s16, 1
      %s186 = smul.addr %s185, 8
      %s187 = smul.addr %s186, 8
      %s188 = scalar_lea.vmem %s2, %s187
      %p189 = pneg %p110
      %p190 = pneg %p107
      %p191 = scmp.lt.s32.totalorder %s16, 1
      %s192 = scalar_select %p191, %s16, 1
      %s193 = scalar_lea.vmem %s3, %s192
      %p194 = pneg %p136
      %p195 = pneg %p133
      %p196 = scmp.lt.s32.totalorder %s16, 1
      %s197 = scalar_select %p196, %s16, 1
      %s198 = scalar_lea.vmem %s4, %s197
      %p199 = scmp.lt.s32.totalorder %s16, 1
      %s200 = scalar_select %p199, %s16, 1
      %s201 = smul.addr %s200, 16
      %s202 = smul.addr %s201, 8
      %s203 = scalar_lea.vmem %s0, %s202
      %p204 = scmp.lt.s32.totalorder %s16, 1
      %s205 = scalar_select %p204, %s16, 1
      %s206 = smul.addr %s205, 8
      %s207 = smul.addr %s206, 8
      %s208 = scalar_lea.vmem %s2, %s207
      %p209 = scmp.lt.s32.totalorder %s16, 1
      %s210 = scalar_select %p209, %s16, 1
      %s211 = scalar_lea.vmem %s3, %s210
      %p212 = scmp.lt.s32.totalorder %s16, 1
      %s213 = scalar_select %p212, %s16, 1
      %s214 = scalar_lea.vmem %s4, %s213
      %v215 = vld [vmem:[%s203] sm:$0xff]
      %v216 = vld [vmem:[%s203 + $0x8] sm:$0xff]
      %v217 = vld [vmem:[%s203 + $0x10] sm:$0xff]
      %v218 = vld [vmem:[%s203 + $0x18] sm:$0xff]
      %v219 = vld [vmem:[%s203 + $0x20] sm:$0xff]
      %v220 = vld [vmem:[%s203 + $0x28] sm:$0xff]
      %v221 = vld [vmem:[%s203 + $0x30] sm:$0xff]
      %v222 = vld [vmem:[%s203 + $0x38] sm:$0xff]
      %v223 = vld [vmem:[%s203 + $0x40] sm:$0xff]
      %v224 = vld [vmem:[%s203 + $0x48] sm:$0xff]
      %v225 = vld [vmem:[%s203 + $0x50] sm:$0xff]
      %v226 = vld [vmem:[%s203 + $0x58] sm:$0xff]
      %v227 = vld [vmem:[%s203 + $0x60] sm:$0xff]
      %v228 = vld [vmem:[%s203 + $0x68] sm:$0xff]
      %v229 = vld [vmem:[%s203 + $0x70] sm:$0xff]
      %v230 = vld [vmem:[%s203 + $0x78] sm:$0xff]
      %247 = vrot.lane.b32.xlu0 %v215, 124
      %v248 = vpop.permute.xlu0 %247
      %249 = vrot.lane.b32.xlu0 %v216, 124
      %v250 = vpop.permute.xlu0 %249
      %251 = vrot.lane.b32.xlu0 %v217, 124
      %v252 = vpop.permute.xlu0 %251
      %253 = vrot.lane.b32.xlu0 %v218, 124
      %v254 = vpop.permute.xlu0 %253
      %255 = vrot.lane.b32.xlu0 %v219, 124
      %v256 = vpop.permute.xlu0 %255
      %257 = vrot.lane.b32.xlu0 %v220, 124
      %v258 = vpop.permute.xlu0 %257
      %259 = vrot.lane.b32.xlu0 %v221, 124
      %v260 = vpop.permute.xlu0 %259
      %261 = vrot.lane.b32.xlu0 %v222, 124
      %v262 = vpop.permute.xlu0 %261
      %263 = vrot.lane.b32.xlu0 %v223, 124
      %v264 = vpop.permute.xlu0 %263
      %265 = vrot.lane.b32.xlu0 %v224, 124
      %v266 = vpop.permute.xlu0 %265
      %267 = vrot.lane.b32.xlu0 %v225, 124
      %v268 = vpop.permute.xlu0 %267
      %269 = vrot.lane.b32.xlu0 %v226, 124
      %v270 = vpop.permute.xlu0 %269
      %271 = vrot.lane.b32.xlu0 %v227, 124
      %v272 = vpop.permute.xlu0 %271
      %273 = vrot.lane.b32.xlu0 %v228, 124
      %v274 = vpop.permute.xlu0 %273
      %275 = vrot.lane.b32.xlu0 %v229, 124
      %v276 = vpop.permute.xlu0 %275
      %277 = vrot.lane.b32.xlu0 %v230, 124
      %v278 = vpop.permute.xlu0 %277
      %v295 = vmax.f32 %v215, %v248
      %v296 = vmax.f32 %v216, %v250
      %v297 = vmax.f32 %v217, %v252
      %v298 = vmax.f32 %v218, %v254
      %v299 = vmax.f32 %v219, %v256
      %v300 = vmax.f32 %v220, %v258
      %v301 = vmax.f32 %v221, %v260
      %v302 = vmax.f32 %v222, %v262
      %v303 = vmax.f32 %v223, %v264
      %v304 = vmax.f32 %v224, %v266
      %v305 = vmax.f32 %v225, %v268
      %v306 = vmax.f32 %v226, %v270
      %v307 = vmax.f32 %v227, %v272
      %v308 = vmax.f32 %v228, %v274
      %v309 = vmax.f32 %v229, %v276
      %v310 = vmax.f32 %v230, %v278
      %v311 = vmax.f32 %v295, %v296
      %v312 = vmax.f32 %v297, %v298
      %v313 = vmax.f32 %v299, %v300
      %v314 = vmax.f32 %v301, %v302
      %v315 = vmax.f32 %v303, %v304
      %v316 = vmax.f32 %v305, %v306
      %v317 = vmax.f32 %v307, %v308
      %v318 = vmax.f32 %v309, %v310
      %v328 = vrot.slane 0.0, 7
      %v329 = vrot.slane %v311, 7
      %v330 = vrot.slane %v312, 7
      %v331 = vrot.slane %v313, 7
      %v332 = vrot.slane %v314, 7
      %v333 = vrot.slane %v315, 7
      %v334 = vrot.slane %v316, 7
      %v335 = vrot.slane %v317, 7
      %v336 = vrot.slane %v318, 7
      %vm346 = vcmask 1040384
      %v347 = vsel %vm346, 0.0, %v328
      %v348 = vsel %vm346, 0.0, %v329
      %v349 = vsel %vm346, 0.0, %v330
      %v350 = vsel %vm346, 0.0, %v331
      %v351 = vsel %vm346, 0.0, %v332
      %v352 = vsel %vm346, 0.0, %v333
      %v353 = vsel %vm346, 0.0, %v334
      %v354 = vsel %vm346, 0.0, %v335
      %v355 = vsel %vm346, 0.0, %v336
      %v356 = vsel %vm346, %v328, 0.0
      %v357 = vsel %vm346, %v329, 0.0
      %v358 = vsel %vm346, %v330, 0.0
      %v359 = vsel %vm346, %v331, 0.0
      %v360 = vsel %vm346, %v332, 0.0
      %v361 = vsel %vm346, %v333, 0.0
      %v362 = vsel %vm346, %v334, 0.0
      %v363 = vsel %vm346, %v335, 0.0
      %v364 = vsel %vm346, %v336, 0.0
      %vm383 = vcmask 1046528
      %v384 = vrot.slane %v347, 1
      %v385 = vrot.slane %v356, 1
      %v386 = vsel %vm383, %v384, %v385
      %v387 = vrot.slane %v348, 1
      %v388 = vrot.slane %v357, 1
      %v389 = vsel %vm383, %v387, %v388
      %v390 = vrot.slane %v349, 1
      %v391 = vrot.slane %v358, 1
      %v392 = vsel %vm383, %v390, %v391
      %v393 = vrot.slane %v350, 1
      %v394 = vrot.slane %v359, 1
      %v395 = vsel %vm383, %v393, %v394
      %v396 = vrot.slane %v351, 1
      %v397 = vrot.slane %v360, 1
      %v398 = vsel %vm383, %v396, %v397
      %v399 = vrot.slane %v352, 1
      %v400 = vrot.slane %v361, 1
      %v401 = vsel %vm383, %v399, %v400
      %v402 = vrot.slane %v353, 1
      %v403 = vrot.slane %v362, 1
      %v404 = vsel %vm383, %v402, %v403
      %v405 = vrot.slane %v354, 1
      %v406 = vrot.slane %v363, 1
      %v407 = vsel %vm383, %v405, %v406
      %v408 = vrot.slane %v355, 1
      %v409 = vrot.slane %v364, 1
      %v410 = vsel %vm383, %v408, %v409
      %411 = vrot.lane.b32.xlu0 %v386, 4
      %v412 = vpop.permute.xlu0 %411
      %413 = vrot.lane.b32.xlu0 %v389, 4
      %v414 = vpop.permute.xlu0 %413
      %415 = vrot.lane.b32.xlu0 %v392, 4
      %v416 = vpop.permute.xlu0 %415
      %417 = vrot.lane.b32.xlu0 %v395, 4
      %v418 = vpop.permute.xlu0 %417
      %419 = vrot.lane.b32.xlu0 %v398, 4
      %v420 = vpop.permute.xlu0 %419
      %421 = vrot.lane.b32.xlu0 %v401, 4
      %v422 = vpop.permute.xlu0 %421
      %423 = vrot.lane.b32.xlu0 %v404, 4
      %v424 = vpop.permute.xlu0 %423
      %425 = vrot.lane.b32.xlu0 %v407, 4
      %v426 = vpop.permute.xlu0 %425
      %427 = vrot.lane.b32.xlu0 %v410, 4
      %v428 = vpop.permute.xlu0 %427
      %vm438 = vcmask 1045504
      %v439 = vrot.slane %v347, 2
      %v440 = vrot.slane %v356, 2
      %v441 = vsel %vm438, %v439, %v440
      %v442 = vrot.slane %v348, 2
      %v443 = vrot.slane %v357, 2
      %v444 = vsel %vm438, %v442, %v443
      %v445 = vrot.slane %v349, 2
      %v446 = vrot.slane %v358, 2
      %v447 = vsel %vm438, %v445, %v446
      %v448 = vrot.slane %v350, 2
      %v449 = vrot.slane %v359, 2
      %v450 = vsel %vm438, %v448, %v449
      %v451 = vrot.slane %v351, 2
      %v452 = vrot.slane %v360, 2
      %v453 = vsel %vm438, %v451, %v452
      %v454 = vrot.slane %v352, 2
      %v455 = vrot.slane %v361, 2
      %v456 = vsel %vm438, %v454, %v455
      %v457 = vrot.slane %v353, 2
      %v458 = vrot.slane %v362, 2
      %v459 = vsel %vm438, %v457, %v458
      %v460 = vrot.slane %v354, 2
      %v461 = vrot.slane %v363, 2
      %v462 = vsel %vm438, %v460, %v461
      %v463 = vrot.slane %v355, 2
      %v464 = vrot.slane %v364, 2
      %v465 = vsel %vm438, %v463, %v464
      %466 = vrot.lane.b32.xlu0 %v441, 8
      %v467 = vpop.permute.xlu0 %466
      %468 = vrot.lane.b32.xlu0 %v444, 8
      %v469 = vpop.permute.xlu0 %468
      %470 = vrot.lane.b32.xlu0 %v447, 8
      %v471 = vpop.permute.xlu0 %470
      %472 = vrot.lane.b32.xlu0 %v450, 8
      %v473 = vpop.permute.xlu0 %472
      %474 = vrot.lane.b32.xlu0 %v453, 8
      %v475 = vpop.permute.xlu0 %474
      %476 = vrot.lane.b32.xlu0 %v456, 8
      %v477 = vpop.permute.xlu0 %476
      %478 = vrot.lane.b32.xlu0 %v459, 8
      %v479 = vpop.permute.xlu0 %478
      %480 = vrot.lane.b32.xlu0 %v462, 8
      %v481 = vpop.permute.xlu0 %480
      %482 = vrot.lane.b32.xlu0 %v465, 8
      %v483 = vpop.permute.xlu0 %482
      %vm493 = vcmask 31744
      %v494 = vsel %vm493, %v347, %v412
      %v495 = vsel %vm493, %v348, %v414
      %v496 = vsel %vm493, %v349, %v416
      %v497 = vsel %vm493, %v350, %v418
      %v498 = vsel %vm493, %v351, %v420
      %v499 = vsel %vm493, %v352, %v422
      %v500 = vsel %vm493, %v353, %v424
      %v501 = vsel %vm493, %v354, %v426
      %v502 = vsel %vm493, %v355, %v428
      %vm503 = vcmask 64512
      %v504 = vsel %vm503, %v494, %v467
      %v505 = vsel %vm503, %v495, %v469
      %v506 = vsel %vm503, %v496, %v471
      %v507 = vsel %vm503, %v497, %v473
      %v508 = vsel %vm503, %v498, %v475
      %v509 = vsel %vm503, %v499, %v477
      %v510 = vsel %vm503, %v500, %v479
      %v511 = vsel %vm503, %v501, %v481
      %v512 = vsel %vm503, %v502, %v483
      %v513 = vld [vmem:[%s1] sm:$0xff]
      %v514 = vld [vmem:[%s1 + $0x8] sm:$0xf]
      %vm515 = vcmask 97280
      %v517 = vsel %vm515, %v504, 0
      %v520 = vsel %vm515, %v505, 0
      %v523 = vsel %vm515, %v506, 0
      %v526 = vsel %vm515, %v507, 0
      %v529 = vsel %vm515, %v508, 0
      %v532 = vsel %vm515, %v509, 0
      %v535 = vsel %vm515, %v510, 0
      %v538 = vsel %vm515, %v511, 0
      %vm540 = vcmask 1043456
      %v542 = vsel %vm540, %v514, 0
      %544 = vmatprep.subr.mxu0 0.0
      %545 = vmatpush1.msra.mxu0 %v513
      %546 = vmatprep.subr.mxu0 0.0
      %547 = vmatpush1.msra.mxu0 %v542
      %548 = vmatprep.subr.mxu0 0.0
      %549 = vmatpush1.msra.mxu0 0.0
      %550 = vmatprep.subr.mxu0 0.0
      %551 = vmatpush1.msra.mxu0 0.0
      %552 = vmatprep.subr.mxu0 0.0
      %553 = vmatpush1.msra.mxu0 0.0
      %554 = vmatprep.subr.mxu0 0.0
      %555 = vmatpush1.msra.mxu0 0.0
      %556 = vmatprep.subr.mxu0 0.0
      %557 = vmatpush1.msra.mxu0 0.0
      %558 = vmatprep.subr.mxu0 0.0
      %559 = vmatpush1.msra.mxu0 0.0
      %560 = vmatprep.subr.mxu0 0.0
      %561 = vmatpush1.msra.mxu0 0.0
      %562 = vmatprep.subr.mxu0 0.0
      %563 = vmatpush1.msra.mxu0 0.0
      %564 = vmatprep.subr.mxu0 0.0
      %565 = vmatpush1.msra.mxu0 0.0
      %566 = vmatprep.subr.mxu0 0.0
      %567 = vmatpush1.msra.mxu0 0.0
      %568 = vmatprep.subr.mxu0 0.0
      %569 = vmatpush1.msra.mxu0 0.0
      %570 = vmatprep.subr.mxu0 0.0
      %571 = vmatpush1.msra.mxu0 0.0
      %572 = vmatprep.subr.mxu0 0.0
      %573 = vmatpush1.msra.mxu0 0.0
      %574 = vmatprep.subr.mxu0 0.0
      %575 = vmatpush1.msra.mxu0 0.0
      %576 = vmatprep.subr.mxu0 0.0
      %577 = vmatpush1.msra.mxu0 0.0
      %578 = vmatprep.subr.mxu0 0.0
      %579 = vmatpush1.msra.mxu0 0.0
      %580 = vmatprep.subr.mxu0 0.0
      %581 = vmatpush1.msra.mxu0 0.0
      %582 = vmatprep.subr.mxu0 0.0
      %583 = vmatpush1.msra.mxu0 0.0
      %584 = vmatprep.subr.mxu0 0.0
      %585 = vmatpush1.msra.mxu0 0.0
      %586 = vmatprep.subr.mxu0 0.0
      %587 = vmatpush1.msra.mxu0 0.0
      %588 = vmatprep.subr.mxu0 0.0
      %589 = vmatpush1.msra.mxu0 0.0
      %590 = vmatprep.subr.mxu0 0.0
      %591 = vmatpush1.msra.mxu0 0.0
      %592 = vmatprep.subr.mxu0 0.0
      %593 = vmatpush1.msra.mxu0 0.0
      %594 = vmatprep.subr.mxu0 0.0
      %595 = vmatpush1.msra.mxu0 0.0
      %596 = vmatprep.subr.mxu0 0.0
      %597 = vmatpush1.msra.mxu0 0.0
      %598 = vmatprep.subr.mxu0 0.0
      %599 = vmatpush1.msra.mxu0 0.0
      %600 = vmatprep.subr.mxu0 0.0
      %601 = vmatpush1.msra.mxu0 0.0
      %602 = vmatprep.subr.mxu0 0.0
      %603 = vmatpush1.msra.mxu0 0.0
      %604 = vmatprep.subr.mxu0 0.0
      %605 = vmatpush1.msra.mxu0 0.0
      %606 = vmatprep.subr.mxu0 0.0
      %607 = vmatpush1.msra.mxu0 0.0
      %608 = vmatprep.mubr.f32.mxu0 0.0
      %609 = vmatmul.mubr.f32.gmra.mrb[0].mxu0 %v517
      %v610 = vpop.f32.mrb[0].mxu0
      %v611 = vadd.f32 0.0, %v610
      %v612 = vpop.f32.mrb[0].mxu0
      %613 = vmatprep.mubr.f32.mxu0 0.0
      %614 = vmatmul.mubr.f32.gmra.mrb[0].mxu0 %v520
      %v615 = vpop.f32.mrb[0].mxu0
      %v616 = vadd.f32 0.0, %v615
      %v617 = vpop.f32.mrb[0].mxu0
      %618 = vmatprep.mubr.f32.mxu0 0.0
      %619 = vmatmul.mubr.f32.gmra.mrb[0].mxu0 %v523
      %v620 = vpop.f32.mrb[0].mxu0
      %v621 = vadd.f32 0.0, %v620
      %v622 = vpop.f32.mrb[0].mxu0
      %623 = vmatprep.mubr.f32.mxu0 0.0
      %624 = vmatmul.mubr.f32.gmra.mrb[0].mxu0 %v526
      %v625 = vpop.f32.mrb[0].mxu0
      %v626 = vadd.f32 0.0, %v625
      %v627 = vpop.f32.mrb[0].mxu0
      %628 = vmatprep.mubr.f32.mxu0 0.0
      %629 = vmatmul.mubr.f32.gmra.mrb[0].mxu0 %v529
      %v630 = vpop.f32.mrb[0].mxu0
      %v631 = vadd.f32 0.0, %v630
      %v632 = vpop.f32.mrb[0].mxu0
      %633 = vmatprep.mubr.f32.mxu0 0.0
      %634 = vmatmul.mubr.f32.gmra.mrb[0].mxu0 %v532
      %v635 = vpop.f32.mrb[0].mxu0
      %v636 = vadd.f32 0.0, %v635
      %v637 = vpop.f32.mrb[0].mxu0
      %638 = vmatprep.mubr.f32.mxu0 0.0
      %639 = vmatmul.mubr.f32.gmra.mrb[0].mxu0 %v535
      %v640 = vpop.f32.mrb[0].mxu0
      %v641 = vadd.f32 0.0, %v640
      %v642 = vpop.f32.mrb[0].mxu0
      %643 = vmatprep.mubr.f32.mxu0 0.0
      %644 = vmatmul.mubr.f32.gmra.mrb[0].mxu0 %v538
      %v645 = vpop.f32.mrb[0].mxu0
      %v646 = vadd.f32 0.0, %v645
      %v647 = vpop.f32.mrb[0].mxu0
      %648 = vdwg.mxu0
      %649 = vst.msk [vmem:[#allocation2] sm:$0xff] %vm503, %v611
      %650 = vst.msk [vmem:[#allocation2 + $0x8] sm:$0xff] %vm503, %v616
      %651 = vst.msk [vmem:[#allocation2 + $0x10] sm:$0xff] %vm503, %v621
      %652 = vst.msk [vmem:[#allocation2 + $0x18] sm:$0xff] %vm503, %v626
      %653 = vst.msk [vmem:[#allocation2 + $0x20] sm:$0xff] %vm503, %v631
      %654 = vst.msk [vmem:[#allocation2 + $0x28] sm:$0xff] %vm503, %v636
      %655 = vst.msk [vmem:[#allocation2 + $0x30] sm:$0xff] %vm503, %v641
      %656 = vst.msk [vmem:[#allocation2 + $0x38] sm:$0xff] %vm503, %v646
      %s657 = scalar_lea.vmem %s1, 16
      %v658 = vld [vmem:[%s657] sm:$0xff]
      %v659 = vld [vmem:[%s657 + $0x8] sm:$0xf]
      %v661 = vsel %vm515, %v512, 0
      %v664 = vsel %vm540, %v659, 0
      %666 = vmatprep.subr.mxu0 0.0
      %667 = vmatpush1.msra.mxu0 %v658
      %668 = vmatprep.subr.mxu0 0.0
      %669 = vmatpush1.msra.mxu0 %v664
      %670 = vmatprep.subr.mxu0 0.0
      %671 = vmatpush1.msra.mxu0 0.0
      %672 = vmatprep.subr.mxu0 0.0
      %673 = vmatpush1.msra.mxu0 0.0
      %674 = vmatprep.subr.mxu0 0.0
      %675 = vmatpush1.msra.mxu0 0.0
      %676 = vmatprep.subr.mxu0 0.0
      %677 = vmatpush1.msra.mxu0 0.0
      %678 = vmatprep.subr.mxu0 0.0
      %679 = vmatpush1.msra.mxu0 0.0
      %680 = vmatprep.subr.mxu0 0.0
      %681 = vmatpush1.msra.mxu0 0.0
      %682 = vmatprep.subr.mxu0 0.0
      %683 = vmatpush1.msra.mxu0 0.0
      %684 = vmatprep.subr.mxu0 0.0
      %685 = vmatpush1.msra.mxu0 0.0
      %686 = vmatprep.subr.mxu0 0.0
      %687 = vmatpush1.msra.mxu0 0.0
      %688 = vmatprep.subr.mxu0 0.0
      %689 = vmatpush1.msra.mxu0 0.0
      %690 = vmatprep.subr.mxu0 0.0
      %691 = vmatpush1.msra.mxu0 0.0
      %692 = vmatprep.subr.mxu0 0.0
      %693 = vmatpush1.msra.mxu0 0.0
      %694 = vmatprep.subr.mxu0 0.0
      %695 = vmatpush1.msra.mxu0 0.0
      %696 = vmatprep.subr.mxu0 0.0
      %697 = vmatpush1.msra.mxu0 0.0
      %698 = vmatprep.subr.mxu0 0.0
      %699 = vmatpush1.msra.mxu0 0.0
      %700 = vmatprep.subr.mxu0 0.0
      %701 = vmatpush1.msra.mxu0 0.0
      %702 = vmatprep.subr.mxu0 0.0
      %703 = vmatpush1.msra.mxu0 0.0
      %704 = vmatprep.subr.mxu0 0.0
      %705 = vmatpush1.msra.mxu0 0.0
      %706 = vmatprep.subr.mxu0 0.0
      %707 = vmatpush1.msra.mxu0 0.0
      %708 = vmatprep.subr.mxu0 0.0
      %709 = vmatpush1.msra.mxu0 0.0
      %710 = vmatprep.subr.mxu0 0.0
      %711 = vmatpush1.msra.mxu0 0.0
      %712 = vmatprep.subr.mxu0 0.0
      %713 = vmatpush1.msra.mxu0 0.0
      %714 = vmatprep.subr.mxu0 0.0
      %715 = vmatpush1.msra.mxu0 0.0
      %716 = vmatprep.subr.mxu0 0.0
      %717 = vmatpush1.msra.mxu0 0.0
      %718 = vmatprep.subr.mxu0 0.0
      %719 = vmatpush1.msra.mxu0 0.0
      %720 = vmatprep.subr.mxu0 0.0
      %721 = vmatpush1.msra.mxu0 0.0
      %722 = vmatprep.subr.mxu0 0.0
      %723 = vmatpush1.msra.mxu0 0.0
      %724 = vmatprep.subr.mxu0 0.0
      %725 = vmatpush1.msra.mxu0 0.0
      %726 = vmatprep.subr.mxu0 0.0
      %727 = vmatpush1.msra.mxu0 0.0
      %728 = vmatprep.subr.mxu0 0.0
      %729 = vmatpush1.msra.mxu0 0.0
      %730 = vmatprep.mubr.f32.mxu0 0.0
      %731 = vmatmul.mubr.f32.gmra.mrb[0].mxu0 %v520
      %v732 = vpop.f32.mrb[0].mxu0
      %v733 = vadd.f32 0.0, %v732
      %v734 = vpop.f32.mrb[0].mxu0
      %735 = vmatprep.mubr.f32.mxu0 0.0
      %736 = vmatmul.mubr.f32.gmra.mrb[0].mxu0 %v523
      %v737 = vpop.f32.mrb[0].mxu0
      %v738 = vadd.f32 0.0, %v737
      %v739 = vpop.f32.mrb[0].mxu0
      %740 = vmatprep.mubr.f32.mxu0 0.0
      %741 = vmatmul.mubr.f32.gmra.mrb[0].mxu0 %v526
      %v742 = vpop.f32.mrb[0].mxu0
      %v743 = vadd.f32 0.0, %v742
      %v744 = vpop.f32.mrb[0].mxu0
      %745 = vmatprep.mubr.f32.mxu0 0.0
      %746 = vmatmul.mubr.f32.gmra.mrb[0].mxu0 %v529
      %v747 = vpop.f32.mrb[0].mxu0
      %v748 = vadd.f32 0.0, %v747
      %v749 = vpop.f32.mrb[0].mxu0
      %750 = vmatprep.mubr.f32.mxu0 0.0
      %751 = vmatmul.mubr.f32.gmra.mrb[0].mxu0 %v532
      %v752 = vpop.f32.mrb[0].mxu0
      %v753 = vadd.f32 0.0, %v752
      %v754 = vpop.f32.mrb[0].mxu0
      %755 = vmatprep.mubr.f32.mxu0 0.0
      %756 = vmatmul.mubr.f32.gmra.mrb[0].mxu0 %v535
      %v757 = vpop.f32.mrb[0].mxu0
      %v758 = vadd.f32 0.0, %v757
      %v759 = vpop.f32.mrb[0].mxu0
      %760 = vmatprep.mubr.f32.mxu0 0.0
      %761 = vmatmul.mubr.f32.gmra.mrb[0].mxu0 %v538
      %v762 = vpop.f32.mrb[0].mxu0
      %v763 = vadd.f32 0.0, %v762
      %v764 = vpop.f32.mrb[0].mxu0
      %765 = vmatprep.mubr.f32.mxu0 0.0
      %766 = vmatmul.mubr.f32.gmra.mrb[0].mxu0 %v661
      %v767 = vpop.f32.mrb[0].mxu0
      %v768 = vadd.f32 0.0, %v767
      %v769 = vpop.f32.mrb[0].mxu0
      %770 = vdwg.mxu0
      %v771 = vld [vmem:[#allocation2] sm:$0xff]
      %v772 = vld [vmem:[#allocation2 + $0x8] sm:$0xff]
      %v773 = vld [vmem:[#allocation2 + $0x10] sm:$0xff]
      %v774 = vld [vmem:[#allocation2 + $0x18] sm:$0xff]
      %v775 = vld [vmem:[#allocation2 + $0x20] sm:$0xff]
      %v776 = vld [vmem:[#allocation2 + $0x28] sm:$0xff]
      %v777 = vld [vmem:[#allocation2 + $0x30] sm:$0xff]
      %v778 = vld [vmem:[#allocation2 + $0x38] sm:$0xff]
      %v779 = vadd.f32 %v771, %v733
      %v780 = vadd.f32 %v772, %v738
      %v781 = vadd.f32 %v773, %v743
      %v782 = vadd.f32 %v774, %v748
      %v783 = vadd.f32 %v775, %v753
      %v784 = vadd.f32 %v776, %v758
      %v785 = vadd.f32 %v777, %v763
      %v786 = vadd.f32 %v778, %v768
      %787 = vst.msk [vmem:[#allocation2] sm:$0xff] %vm503, %v779
      %788 = vst.msk [vmem:[#allocation2 + $0x8] sm:$0xff] %vm503, %v780
      %789 = vst.msk [vmem:[#allocation2 + $0x10] sm:$0xff] %vm503, %v781
      %790 = vst.msk [vmem:[#allocation2 + $0x18] sm:$0xff] %vm503, %v782
      %791 = vst.msk [vmem:[#allocation2 + $0x20] sm:$0xff] %vm503, %v783
      %792 = vst.msk [vmem:[#allocation2 + $0x28] sm:$0xff] %vm503, %v784
      %793 = vst.msk [vmem:[#allocation2 + $0x30] sm:$0xff] %vm503, %v785
      %794 = vst.msk [vmem:[#allocation2 + $0x38] sm:$0xff] %vm503, %v786
      %s795 = scalar_lea.vmem %s1, 32
      %v796 = vld [vmem:[%s795] sm:$0xff]
      %v797 = vld [vmem:[%s795 + $0x8] sm:$0xf]
      %v799 = vsel %vm540, %v797, 0
      %801 = vmatprep.subr.mxu0 0.0
      %802 = vmatpush1.msra.mxu0 %v796
      %803 = vmatprep.subr.mxu0 0.0
      %804 = vmatpush1.msra.mxu0 %v799
      %805 = vmatprep.subr.mxu0 0.0
      %806 = vmatpush1.msra.mxu0 0.0
      %807 = vmatprep.subr.mxu0 0.0
      %808 = vmatpush1.msra.mxu0 0.0
      %809 = vmatprep.subr.mxu0 0.0
      %810 = vmatpush1.msra.mxu0 0.0
      %811 = vmatprep.subr.mxu0 0.0
      %812 = vmatpush1.msra.mxu0 0.0
      %813 = vmatprep.subr.mxu0 0.0
      %814 = vmatpush1.msra.mxu0 0.0
      %815 = vmatprep.subr.mxu0 0.0
      %816 = vmatpush1.msra.mxu0 0.0
      %817 = vmatprep.subr.mxu0 0.0
      %818 = vmatpush1.msra.mxu0 0.0
      %819 = vmatprep.subr.mxu0 0.0
      %820 = vmatpush1.msra.mxu0 0.0
      %821 = vmatprep.subr.mxu0 0.0
      %822 = vmatpush1.msra.mxu0 0.0
      %823 = vmatprep.subr.mxu0 0.0
      %824 = vmatpush1.msra.mxu0 0.0
      %825 = vmatprep.subr.mxu0 0.0
      %826 = vmatpush1.msra.mxu0 0.0
      %827 = vmatprep.subr.mxu0 0.0
      %828 = vmatpush1.msra.mxu0 0.0
      %829 = vmatprep.subr.mxu0 0.0
      %830 = vmatpush1.msra.mxu0 0.0
      %831 = vmatprep.subr.mxu0 0.0
      %832 = vmatpush1.msra.mxu0 0.0
      %833 = vmatprep.subr.mxu0 0.0
      %834 = vmatpush1.msra.mxu0 0.0
      %835 = vmatprep.subr.mxu0 0.0
      %836 = vmatpush1.msra.mxu0 0.0
      %837 = vmatprep.subr.mxu0 0.0
      %838 = vmatpush1.msra.mxu0 0.0
      %839 = vmatprep.subr.mxu0 0.0
      %840 = vmatpush1.msra.mxu0 0.0
      %841 = vmatprep.subr.mxu0 0.0
      %842 = vmatpush1.msra.mxu0 0.0
      %843 = vmatprep.subr.mxu0 0.0
      %844 = vmatpush1.msra.mxu0 0.0
      %845 = vmatprep.subr.mxu0 0.0
      %846 = vmatpush1.msra.mxu0 0.0
      %847 = vmatprep.subr.mxu0 0.0
      %848 = vmatpush1.msra.mxu0 0.0
      %849 = vmatprep.subr.mxu0 0.0
      %850 = vmatpush1.msra.mxu0 0.0
      %851 = vmatprep.subr.mxu0 0.0
      %852 = vmatpush1.msra.mxu0 0.0
      %853 = vmatprep.subr.mxu0 0.0
      %854 = vmatpush1.msra.mxu0 0.0
      %855 = vmatprep.subr.mxu0 0.0
      %856 = vmatpush1.msra.mxu0 0.0
      %857 = vmatprep.subr.mxu0 0.0
      %858 = vmatpush1.msra.mxu0 0.0
      %859 = vmatprep.subr.mxu0 0.0
      %860 = vmatpush1.msra.mxu0 0.0
      %861 = vmatprep.subr.mxu0 0.0
      %862 = vmatpush1.msra.mxu0 0.0
      %863 = vmatprep.subr.mxu0 0.0
      %864 = vmatpush1.msra.mxu0 0.0
      %865 = vmatprep.mubr.f32.mxu0 0.0
      %866 = vmatmul.mubr.f32.gmra.mrb[0].mxu0 %v523
      %v867 = vpop.f32.mrb[0].mxu0
      %v868 = vadd.f32 0.0, %v867
      %v869 = vpop.f32.mrb[0].mxu0
      %870 = vmatprep.mubr.f32.mxu0 0.0
      %871 = vmatmul.mubr.f32.gmra.mrb[0].mxu0 %v526
      %v872 = vpop.f32.mrb[0].mxu0
      %v873 = vadd.f32 0.0, %v872
      %v874 = vpop.f32.mrb[0].mxu0
      %875 = vmatprep.mubr.f32.mxu0 0.0
      %876 = vmatmul.mubr.f32.gmra.mrb[0].mxu0 %v529
      %v877 = vpop.f32.mrb[0].mxu0
      %v878 = vadd.f32 0.0, %v877
      %v879 = vpop.f32.mrb[0].mxu0
      %880 = vmatprep.mubr.f32.mxu0 0.0
      %881 = vmatmul.mubr.f32.gmra.mrb[0].mxu0 %v532
      %v882 = vpop.f32.mrb[0].mxu0
      %v883 = vadd.f32 0.0, %v882
      %v884 = vpop.f32.mrb[0].mxu0
      %885 = vmatprep.mubr.f32.mxu0 0.0
      %886 = vmatmul.mubr.f32.gmra.mrb[0].mxu0 %v535
      %v887 = vpop.f32.mrb[0].mxu0
      %v888 = vadd.f32 0.0, %v887
      %v889 = vpop.f32.mrb[0].mxu0
      %890 = vmatprep.mubr.f32.mxu0 0.0
      %891 = vmatmul.mubr.f32.gmra.mrb[0].mxu0 %v538
      %v892 = vpop.f32.mrb[0].mxu0
      %v893 = vadd.f32 0.0, %v892
      %v894 = vpop.f32.mrb[0].mxu0
      %895 = vmatprep.mubr.f32.mxu0 0.0
      %896 = vmatmul.mubr.f32.gmra.mrb[0].mxu0 %v661
      %v897 = vpop.f32.mrb[0].mxu0
      %v898 = vadd.f32 0.0, %v897
      %v899 = vpop.f32.mrb[0].mxu0
      %900 = vmatprep.mubr.f32.mxu0 0.0
      %901 = vmatmul.mubr.f32.gmra.mrb[0].mxu0 %v517
      %v902 = vpop.f32.mrb[0].mxu0
      %v903 = vadd.f32 0.0, %v902
      %v904 = vpop.f32.mrb[0].mxu0
      %905 = vdwg.mxu0
      %v906 = vld [vmem:[#allocation2] sm:$0xff]
      %v907 = vld [vmem:[#allocation2 + $0x8] sm:$0xff]
      %v908 = vld [vmem:[#allocation2 + $0x10] sm:$0xff]
      %v909 = vld [vmem:[#allocation2 + $0x18] sm:$0xff]
      %v910 = vld [vmem:[#allocation2 + $0x20] sm:$0xff]
      %v911 = vld [vmem:[#allocation2 + $0x28] sm:$0xff]
      %v912 = vld [vmem:[#allocation2 + $0x30] sm:$0xff]
      %v913 = vld [vmem:[#allocation2 + $0x38] sm:$0xff]
      %v914 = vadd.f32 %v906, %v868
      %v915 = vadd.f32 %v907, %v873
      %v916 = vadd.f32 %v908, %v878
      %v917 = vadd.f32 %v909, %v883
      %v918 = vadd.f32 %v910, %v888
      %v919 = vadd.f32 %v911, %v893
      %v920 = vadd.f32 %v912, %v898
      %v921 = vadd.f32 %v913, %v903
      %922 = vst.msk [vmem:[#allocation2] sm:$0xff] %vm503, %v914
      %923 = vst.msk [vmem:[#allocation2 + $0x8] sm:$0xff] %vm503, %v915
      %924 = vst.msk [vmem:[#allocation2 + $0x10] sm:$0xff] %vm503, %v916
      %925 = vst.msk [vmem:[#allocation2 + $0x18] sm:$0xff] %vm503, %v917
      %926 = vst.msk [vmem:[#allocation2 + $0x20] sm:$0xff] %vm503, %v918
      %927 = vst.msk [vmem:[#allocation2 + $0x28] sm:$0xff] %vm503, %v919
      %928 = vst.msk [vmem:[#allocation2 + $0x30] sm:$0xff] %vm503, %v920
      %929 = vst.msk [vmem:[#allocation2 + $0x38] sm:$0xff] %vm503, %v921
      %v930 = vld [vmem:[#allocation2] sm:$0xff]
      %v931 = vld [vmem:[#allocation2 + $0x8] sm:$0xff]
      %v932 = vld [vmem:[#allocation2 + $0x10] sm:$0xff]
      %v933 = vld [vmem:[#allocation2 + $0x18] sm:$0xff]
      %v934 = vld [vmem:[#allocation2 + $0x20] sm:$0xff]
      %v935 = vld [vmem:[#allocation2 + $0x28] sm:$0xff]
      %v936 = vld [vmem:[#allocation2 + $0x30] sm:$0xff]
      %v937 = vld [vmem:[#allocation2 + $0x38] sm:$0xff]
      %938 = vst.msk [vmem:[%s208] sm:$0xff] %vm503, %v930
      %939 = vst.msk [vmem:[%s208 + $0x8] sm:$0xff] %vm503, %v931
      %940 = vst.msk [vmem:[%s208 + $0x10] sm:$0xff] %vm503, %v932
      %941 = vst.msk [vmem:[%s208 + $0x18] sm:$0xff] %vm503, %v933
      %942 = vst.msk [vmem:[%s208 + $0x20] sm:$0xff] %vm503, %v934
      %943 = vst.msk [vmem:[%s208 + $0x28] sm:$0xff] %vm503, %v935
      %944 = vst.msk [vmem:[%s208 + $0x30] sm:$0xff] %vm503, %v936
      %945 = vst.msk [vmem:[%s208 + $0x38] sm:$0xff] %vm503, %v937
      %v946 = vsel %vm503, %v930, 0.0
      %v947 = vsel %vm503, %v931, 0.0
      %v948 = vadd.f32 %v946, %v947
      %v949 = vsel %vm503, %v932, 0.0
      %v950 = vadd.f32 %v948, %v949
      %v951 = vsel %vm503, %v933, 0.0
      %v952 = vadd.f32 %v950, %v951
      %v953 = vsel %vm503, %v934, 0.0
      %v954 = vadd.f32 %v952, %v953
      %v955 = vsel %vm503, %v935, 0.0
      %v956 = vadd.f32 %v954, %v955
      %v957 = vsel %vm503, %v936, 0.0
      %v958 = vadd.f32 %v956, %v957
      %v959 = vsel %vm503, %v937, 0.0
      %v960 = vadd.f32 %v958, %v959
      %v961 = vrot.slane %v960, 4
      %v962 = vadd.f32 %v960, %v961
      %v963 = vrot.slane %v962, 2
      %v964 = vadd.f32 %v962, %v963
      %v965 = vrot.slane %v964, 1
      %v966 = vadd.f32 %v964, %v965
      %vm967 = vcmask 57344
      %968 = vst.msk [vmem:[%s211] sm:$0x1] %vm967, %v966
      %v969 = vmul.f32 %v930, %v930
      %v970 = vmul.f32 %v931, %v931
      %v971 = vmul.f32 %v932, %v932
      %v972 = vmul.f32 %v933, %v933
      %v973 = vmul.f32 %v934, %v934
      %v974 = vmul.f32 %v935, %v935
      %v975 = vmul.f32 %v936, %v936
      %v976 = vmul.f32 %v937, %v937
      %v977 = vsel %vm503, %v969, 0.0
      %v978 = vsel %vm503, %v970, 0.0
      %v979 = vadd.f32 %v977, %v978
      %v980 = vsel %vm503, %v971, 0.0
      %v981 = vadd.f32 %v979, %v980
      %v982 = vsel %vm503, %v972, 0.0
      %v983 = vadd.f32 %v981, %v982
      %v984 = vsel %vm503, %v973, 0.0
      %v985 = vadd.f32 %v983, %v984
      %v986 = vsel %vm503, %v974, 0.0
      %v987 = vadd.f32 %v985, %v986
      %v988 = vsel %vm503, %v975, 0.0
      %v989 = vadd.f32 %v987, %v988
      %v990 = vsel %vm503, %v976, 0.0
      %v991 = vadd.f32 %v989, %v990
      %v992 = vrot.slane %v991, 4
      %v993 = vadd.f32 %v991, %v992
      %v994 = vrot.slane %v993, 2
      %v995 = vadd.f32 %v993, %v994
      %v996 = vrot.slane %v995, 1
      %v997 = vadd.f32 %v995, %v996
      %998 = vst.msk [vmem:[%s214] sm:$0x1] %vm967, %v997
      %p999 = scmp.lt.s32.totalorder %s16, 1
      %s1000 = scalar_select %p999, %s16, 1
      %s1001 = smul.addr %s1000, 8
      %s1002 = smul.addr %s1001, 8
      %s1003 = scalar_lea.vmem %s2, %s1002
      %p1004 = scmp.lt.s32.totalorder %s16, 1
      %s1005 = scalar_select %p1004, %s16, 1
      %s1006 = scalar_lea.vmem %s3, %s1005
      %p1007 = scmp.lt.s32.totalorder %s16, 1
      %s1008 = scalar_select %p1007, %s16, 1
      %s1009 = scalar_lea.vmem %s4, %s1008
      // Predicated region
      $region29: #{encoder_block_forward.3} parent=27 // pred_check
        %p1010 = pneg %p81
      $region30: #{encoder_block_forward.3} parent=27 // pred_check_branch
        %1012 = sbr.rel (%p1010) target = $region32
      $region31: #{encoder_block_forward.3} parent=27 // pred_region
        _
      $region32: #{encoder_block_forward.3} parent=27 // pred_fallthru
        _
      // Predicated region
      $region33: #{encoder_block_forward.3} parent=27 // pred_check
        %p1013 = pneg %p107
      $region34: #{encoder_block_forward.3} parent=27 // pred_check_branch
        %1015 = sbr.rel (%p1013) target = $region36
      $region35: #{encoder_block_forward.3} parent=27 // pred_region
        _
      $region36: #{encoder_block_forward.3} parent=27 // pred_fallthru
        _
      // Predicated region
      $region37: #{encoder_block_forward.3} parent=27 // pred_check
        %p1016 = pneg %p133
      $region38: #{encoder_block_forward.3} parent=27 // pred_check_branch
        %1018 = sbr.rel (%p1016) target = $region40
      $region39: #{encoder_block_forward.3} parent=27 // pred_region
        _
      $region40: #{encoder_block_forward.3} parent=27 // pred_fallthru
        _
    $region28: #{encoder_block_forward.3} parent=5 // pred_fallthru
      _
    %p1019 = scmp.le.s32.totalorder 2, %s11
    // Predicated region
    $region41: #{encoder_block_forward.3} parent=5 // pred_check
      %p1020 = pneg %p1019
    $region42: #{encoder_block_forward.3} parent=5 // pred_check_branch
      %1022 = sbr.rel (%p1020) target = $region44
    $region43: #{encoder_block_forward.3} parent=5 // pred_region
      %s1023 = ssub.s32 %s11, 2
      // Predicated region
      $region45: #{encoder_block_forward.3} parent=43 // pred_check
        %p1024 = pneg %p87
      $region46: #{encoder_block_forward.3} parent=43 // pred_check_branch
        %1026 = sbr.rel (%p1024) target = $region48
      $region47: #{encoder_block_forward.3} parent=43 // pred_region
        %p1027 = scmp.lt.s32.totalorder %s17, 1
        %s1028 = scalar_select %p1027, %s17, 1
        %s1029 = smul.addr %s1028, 8
        %s1030 = smul.addr %s1029, 8
        %s1031 = scalar_lea.vmem %s2, %s1030
      $region48: #{encoder_block_forward.3} parent=43 // pred_fallthru
        _
      // Predicated region
      $region49: #{encoder_block_forward.3} parent=43 // pred_check
        %p1032 = pneg %p113
      $region50: #{encoder_block_forward.3} parent=43 // pred_check_branch
        %1034 = sbr.rel (%p1032) target = $region52
      $region51: #{encoder_block_forward.3} parent=43 // pred_region
        %p1035 = scmp.lt.s32.totalorder %s17, 1
        %s1036 = scalar_select %p1035, %s17, 1
        %s1037 = scalar_lea.vmem %s3, %s1036
      $region52: #{encoder_block_forward.3} parent=43 // pred_fallthru
        _
      // Predicated region
      $region53: #{encoder_block_forward.3} parent=43 // pred_check
        %p1038 = pneg %p139
      $region54: #{encoder_block_forward.3} parent=43 // pred_check_branch
        %1040 = sbr.rel (%p1038) target = $region56
      $region55: #{encoder_block_forward.3} parent=43 // pred_region
        %p1041 = scmp.lt.s32.totalorder %s17, 1
        %s1042 = scalar_select %p1041, %s17, 1
        %s1043 = scalar_lea.vmem %s4, %s1042
      $region56: #{encoder_block_forward.3} parent=43 // pred_fallthru
        _
    $region44: #{encoder_block_forward.3} parent=5 // pred_fallthru
      _
  $region6: #{encoder_block_forward.3} parent=0 // loop_footer
    %s15 = sadd.s32 1, %s11
  $region7: #{encoder_block_forward.3} parent=0 // loop_footer_branch
    %10 = sbr.rel target = $region3
  $region8: #{encoder_block_forward.3} parent=0 // loop_exit
    _

// kernel: encoder_block_forward.4
$region0: #{encoder_block_forward.4}
  #allocation0 [shape = 'u32[]', space=smem, size = 0x4, offset = 0x4, fixed_abs, tag = 'smem constant byte address 0x4 - core index']
  #allocation1 [shape = 'u32[144,128]{1,0:T(1,128)}', space=vmem, size = 0x12000, scoped, tag = 'internal scratch']
  #allocation2 [shape = 'f32[64,8]{1,0:T(8,128)}', space=vmem, size = 0x8000, scoped, tag = 'scratch operand']
  %s0 = inlined_call_operand.vmem [shape: f32[2,8,8,8], index: 0, kind: input, shape index: {}]
  %s1 = inlined_call_operand.vmem [shape: f32[1,8], index: 1, kind: input, shape index: {}]
  %s2 = inlined_call_operand.vmem [shape: f32[1,8], index: 2, kind: input, shape index: {}]
  %s3 = inlined_call_operand.vmem [shape: f32[3,24,8], index: 3, kind: input, shape index: {}]
  %s4 = inlined_call_operand.vmem [shape: f32[2,64,8], index: 4, kind: output, shape index: {0}]
  %s5 = inlined_call_operand.vmem [shape: f32[2,1,8], index: 5, kind: output, shape index: {1}]
  %s6 = inlined_call_operand.vmem [shape: f32[2,1,8], index: 6, kind: output, shape index: {2}]
  %7 = xla_tuple %s4, %s5, %s6
  %s8 = sld [smem:[#allocation0]]
  $region65: #{encoder_block_forward.4} parent=0
    _
  %s10 = ssub.s32 1, %s8
  %s11 = scalar_select 0, %s10, %s8
  loop: start=0, step=1, limit=4
  $region2: #{encoder_block_forward.4} parent=0 // loop_pre_header
    _
  $region3: #{encoder_block_forward.4} parent=0 // loop_header
    %s13 = sphi 0, %s17
    %p14 = scmp.ge.s32.totalorder %s13, 4
    %s23 = sphi 0, %s25
    %s26 = sphi 0, %s23
    %s27 = sphi 0, %s26
    %s43 = sphi 0, %s27
    %s47 = sphi 0, %s47
    %s49 = sphi 0, %s47
    %s50 = sphi 0, %s49
    %s64 = sphi 0, %s50
    %s68 = sphi 0, %s68
    %s70 = sphi 0, %s68
    %s71 = sphi 0, %s70
    %s85 = sphi 0, %s71
    %s89 = sphi 0, %s89
    %s91 = sphi 0, %s89
    %s92 = sphi 0, %s91
    %s106 = sphi 0, %s92
    %s112 = sphi 0, %s114
    %s115 = sphi 0, %s112
    %s116 = sphi 0, %s115
    %s132 = sphi 0, %s116
    %s138 = sphi 0, %s140
    %s141 = sphi 0, %s138
    %s142 = sphi 0, %s141
    %s158 = sphi 0, %s142
    %s164 = sphi 0, %s166
    %s167 = sphi 0, %s164
    %s168 = sphi 0, %s167
    %s184 = sphi 0, %s168
  $region4: #{encoder_block_forward.4} parent=0 // loop_header_branch
    %16 = sbr.rel (%p14) target = $region8
  $region5: #{encoder_block_forward.4} parent=0 // loop_body
    %s18 = ssub.s32 %s13, 1
    %s19 = ssub.s32 %s13, 2
    %s20 = sadd.s32 %s13, 1
    %s21 = ssub.s32 %s13, %s20
    %p22 = scmp.eq.s32.totalorder %s21, 0
    %s24 = sadd.s32 %s23, 1
    %s25 = scalar_select %p22, %s23, %s24
    %p28 = pneg %p22
    %p29 = scmp.eq.s32.totalorder %s13, 1
    %p30 = por %p28, %p29
    %p31 = scmp.ne.s32.totalorder %s23, %s26
    %p32 = scmp.eq.s32.totalorder %s13, 0
    %p33 = por %p31, %p32
    %p34 = scmp.ne.s32.totalorder %s23, %s26
    %p35 = scmp.eq.s32.totalorder %s18, 1
    %p36 = por %p34, %p35
    %p37 = scmp.ne.s32.totalorder %s26, %s27
    %p38 = scmp.eq.s32.totalorder %s18, 0
    %p39 = por %p37, %p38
    %p40 = scmp.ne.s32.totalorder %s26, %s27
    %p41 = scmp.eq.s32.totalorder %s19, 1
    %p42 = por %p40, %p41
    %p44 = scmp.ne.s32.totalorder %s27, %s43
    %p45 = scmp.eq.s32.totalorder %s19, 0
    %p46 = por %p44, %p45
    %s48 = sadd.s32 %s47, 1
    %p51 = scmp.eq.s32.totalorder %s13, 1
    %p52 = scmp.ne.s32.totalorder %s47, %s49
    %p53 = scmp.eq.s32.totalorder %s13, 0
    %p54 = por %p52, %p53
    %p55 = scmp.ne.s32.totalorder %s47, %s49
    %p56 = scmp.eq.s32.totalorder %s18, 1
    %p57 = por %p55, %p56
    %p58 = scmp.ne.s32.totalorder %s49, %s50
    %p59 = scmp.eq.s32.totalorder %s18, 0
    %p60 = por %p58, %p59
    %p61 = scmp.ne.s32.totalorder %s49, %s50
    %p62 = scmp.eq.s32.totalorder %s19, 1
    %p63 = por %p61, %p62
    %p65 = scmp.ne.s32.totalorder %s50, %s64
    %p66 = scmp.eq.s32.totalorder %s19, 0
    %p67 = por %p65, %p66
    %s69 = sadd.s32 %s68, 1
    %p72 = scmp.eq.s32.totalorder %s13, 1
    %p73 = scmp.ne.s32.totalorder %s68, %s70
    %p74 = scmp.eq.s32.totalorder %s13, 0
    %p75 = por %p73, %p74
    %p76 = scmp.ne.s32.totalorder %s68, %s70
    %p77 = scmp.eq.s32.totalorder %s18, 1
    %p78 = por %p76, %p77
    %p79 = scmp.ne.s32.totalorder %s70, %s71
    %p80 = scmp.eq.s32.totalorder %s18, 0
    %p81 = por %p79, %p80
    %p82 = scmp.ne.s32.totalorder %s70, %s71
    %p83 = scmp.eq.s32.totalorder %s19, 1
    %p84 = por %p82, %p83
    %p86 = scmp.ne.s32.totalorder %s71, %s85
    %p87 = scmp.eq.s32.totalorder %s19, 0
    %p88 = por %p86, %p87
    %s90 = sadd.s32 %s89, 1
    %p93 = scmp.eq.s32.totalorder %s13, 1
    %p94 = scmp.ne.s32.totalorder %s89, %s91
    %p95 = scmp.eq.s32.totalorder %s13, 0
    %p96 = por %p94, %p95
    %p97 = scmp.ne.s32.totalorder %s89, %s91
    %p98 = scmp.eq.s32.totalorder %s18, 1
    %p99 = por %p97, %p98
    %p100 = scmp.ne.s32.totalorder %s91, %s92
    %p101 = scmp.eq.s32.totalorder %s18, 0
    %p102 = por %p100, %p101
    %p103 = scmp.ne.s32.totalorder %s91, %s92
    %p104 = scmp.eq.s32.totalorder %s19, 1
    %p105 = por %p103, %p104
    %p107 = scmp.ne.s32.totalorder %s92, %s106
    %p108 = scmp.eq.s32.totalorder %s19, 0
    %p109 = por %p107, %p108
    %s110 = ssub.s32 %s13, %s20
    %p111 = scmp.eq.s32.totalorder %s110, 0
    %s113 = sadd.s32 %s112, 1
    %s114 = scalar_select %p111, %s112, %s113
    %p117 = pneg %p111
    %p118 = scmp.eq.s32.totalorder %s13, 1
    %p119 = por %p117, %p118
    %p120 = scmp.ne.s32.totalorder %s112, %s115
    %p121 = scmp.eq.s32.totalorder %s13, 0
    %p122 = por %p120, %p121
    %p123 = scmp.ne.s32.totalorder %s112, %s115
    %p124 = scmp.eq.s32.totalorder %s18, 1
    %p125 = por %p123, %p124
    %p126 = scmp.ne.s32.totalorder %s115, %s116
    %p127 = scmp.eq.s32.totalorder %s18, 0
    %p128 = por %p126, %p127
    %p129 = scmp.ne.s32.totalorder %s115, %s116
    %p130 = scmp.eq.s32.totalorder %s19, 1
    %p131 = por %p129, %p130
    %p133 = scmp.ne.s32.totalorder %s116, %s132
    %p134 = scmp.eq.s32.totalorder %s19, 0
    %p135 = por %p133, %p134
    %s136 = ssub.s32 %s13, %s20
    %p137 = scmp.eq.s32.totalorder %s136, 0
    %s139 = sadd.s32 %s138, 1
    %s140 = scalar_select %p137, %s138, %s139
    %p143 = pneg %p137
    %p144 = scmp.eq.s32.totalorder %s13, 1
    %p145 = por %p143, %p144
    %p146 = scmp.ne.s32.totalorder %s138, %s141
    %p147 = scmp.eq.s32.totalorder %s13, 0
    %p148 = por %p146, %p147
    %p149 = scmp.ne.s32.totalorder %s138, %s141
    %p150 = scmp.eq.s32.totalorder %s18, 1
    %p151 = por %p149, %p150
    %p152 = scmp.ne.s32.totalorder %s141, %s142
    %p153 = scmp.eq.s32.totalorder %s18, 0
    %p154 = por %p152, %p153
    %p155 = scmp.ne.s32.totalorder %s141, %s142
    %p156 = scmp.eq.s32.totalorder %s19, 1
    %p157 = por %p155, %p156
    %p159 = scmp.ne.s32.totalorder %s142, %s158
    %p160 = scmp.eq.s32.totalorder %s19, 0
    %p161 = por %p159, %p160
    %s162 = ssub.s32 %s13, %s20
    %p163 = scmp.eq.s32.totalorder %s162, 0
    %s165 = sadd.s32 %s164, 1
    %s166 = scalar_select %p163, %s164, %s165
    %p169 = pneg %p163
    %p170 = scmp.eq.s32.totalorder %s13, 1
    %p171 = por %p169, %p170
    %p172 = scmp.ne.s32.totalorder %s164, %s167
    %p173 = scmp.eq.s32.totalorder %s13, 0
    %p174 = por %p172, %p173
    %p175 = scmp.ne.s32.totalorder %s164, %s167
    %p176 = scmp.eq.s32.totalorder %s18, 1
    %p177 = por %p175, %p176
    %p178 = scmp.ne.s32.totalorder %s167, %s168
    %p179 = scmp.eq.s32.totalorder %s18, 0
    %p180 = por %p178, %p179
    %p181 = scmp.ne.s32.totalorder %s167, %s168
    %p182 = scmp.eq.s32.totalorder %s19, 1
    %p183 = por %p181, %p182
    %p185 = scmp.ne.s32.totalorder %s168, %s184
    %p186 = scmp.eq.s32.totalorder %s19, 0
    %p187 = por %p185, %p186
    %p188 = scmp.le.s32.totalorder 1, %s13
    %p189 = scmp.lt.s32.totalorder %s13, 3
    %p190 = pnand %p188, %p189
    %p191 = pneg %p190
    // Predicated region
    $region9: #{encoder_block_forward.4} parent=5 // pred_check
      _
    $region10: #{encoder_block_forward.4} parent=5 // pred_check_branch
      %193 = sbr.rel (%p190) target = $region12
    $region11: #{encoder_block_forward.4} parent=5 // pred_region
      %s194 = ssub.s32 %s13, 1
      // Predicated region
      $region13: #{encoder_block_forward.4} parent=11 // pred_check
        %p195 = pneg %p60
      $region14: #{encoder_block_forward.4} parent=11 // pred_check_branch
        %197 = sbr.rel (%p195) target = $region16
      $region15: #{encoder_block_forward.4} parent=11 // pred_region
        _
      $region16: #{encoder_block_forward.4} parent=11 // pred_fallthru
        _
      // Predicated region
      $region17: #{encoder_block_forward.4} parent=11 // pred_check
        %p198 = pneg %p81
      $region18: #{encoder_block_forward.4} parent=11 // pred_check_branch
        %200 = sbr.rel (%p198) target = $region20
      $region19: #{encoder_block_forward.4} parent=11 // pred_region
        _
      $region20: #{encoder_block_forward.4} parent=11 // pred_fallthru
        _
      // Predicated region
      $region21: #{encoder_block_forward.4} parent=11 // pred_check
        %p201 = pneg %p102
      $region22: #{encoder_block_forward.4} parent=11 // pred_check_branch
        %203 = sbr.rel (%p201) target = $region24
      $region23: #{encoder_block_forward.4} parent=11 // pred_region
        _
      $region24: #{encoder_block_forward.4} parent=11 // pred_fallthru
        _
    $region12: #{encoder_block_forward.4} parent=5 // pred_fallthru
      _
    %p204 = scmp.lt.s32.totalorder %s13, 2
    // Predicated region
    $region25: #{encoder_block_forward.4} parent=5 // pred_check
      %p205 = pneg %p204
    $region26: #{encoder_block_forward.4} parent=5 // pred_check_branch
      %207 = sbr.rel (%p205) target = $region28
    $region27: #{encoder_block_forward.4} parent=5 // pred_region
      // Predicated region
      $region29: #{encoder_block_forward.4} parent=27 // pred_check
        %p208 = pneg %p33
      $region30: #{encoder_block_forward.4} parent=27 // pred_check_branch
        %210 = sbr.rel (%p208) target = $region32
      $region31: #{encoder_block_forward.4} parent=27 // pred_region
        %p211 = scmp.lt.s32.totalorder %s13, 1
        %s212 = scalar_select %p211, %s13, 1
        %s213 = smul.addr %s212, 8
        %s214 = smul.addr %s213, 8
        %s215 = scalar_lea.vmem %s0, %s214
      $region32: #{encoder_block_forward.4} parent=27 // pred_fallthru
        _
    $region28: #{encoder_block_forward.4} parent=5 // pred_fallthru
      _
    %p216 = scmp.le.s32.totalorder 1, %s13
    %p217 = scmp.lt.s32.totalorder %s13, 3
    %p218 = pnand %p216, %p217
    %p219 = pneg %p218
    // Predicated region
    $region33: #{encoder_block_forward.4} parent=5 // pred_check
      _
    $region34: #{encoder_block_forward.4} parent=5 // pred_check_branch
      %221 = sbr.rel (%p218) target = $region36
    $region35: #{encoder_block_forward.4} parent=5 // pred_region
      %s222 = ssub.s32 %s13, 1
      %p223 = scmp.lt.s32.totalorder %s18, 1
      %s224 = scalar_select %p223, %s18, 1
      %s225 = smul.addr %s224, 8
      %s226 = smul.addr %s225, 8
      %s227 = scalar_lea.vmem %s0, %s226
      %p228 = pneg %p39
      %p229 = pneg %p36
      %p230 = pneg %p60
      %p231 = pneg %p57
      %p232 = pneg %p81
      %p233 = pneg %p78
      %p234 = pneg %p102
      %p235 = pneg %p99
      %p236 = pneg %p128
      %p237 = pneg %p125
      %p238 = scmp.lt.s32.totalorder %s18, 1
      %s239 = scalar_select %p238, %s18, 1
      %s240 = smul.addr %s239, 8
      %s241 = smul.addr %s240, 8
      %s242 = scalar_lea.vmem %s4, %s241
      %p243 = pneg %p154
      %p244 = pneg %p151
      %p245 = scmp.lt.s32.totalorder %s18, 1
      %s246 = scalar_select %p245, %s18, 1
      %s247 = scalar_lea.vmem %s5, %s246
      %p248 = pneg %p180
      %p249 = pneg %p177
      %p250 = scmp.lt.s32.totalorder %s18, 1
      %s251 = scalar_select %p250, %s18, 1
      %s252 = scalar_lea.vmem %s6, %s251
      %p253 = scmp.lt.s32.totalorder %s18, 1
      %s254 = scalar_select %p253, %s18, 1
      %s255 = smul.addr %s254, 8
      %s256 = smul.addr %s255, 8
      %s257 = scalar_lea.vmem %s0, %s256
      %p258 = scmp.lt.s32.totalorder %s18, 1
      %s259 = scalar_select %p258, %s18, 1
      %s260 = smul.addr %s259, 8
      %s261 = smul.addr %s260, 8
      %s262 = scalar_lea.vmem %s4, %s261
      %p263 = scmp.lt.s32.totalorder %s18, 1
      %s264 = scalar_select %p263, %s18, 1
      %s265 = scalar_lea.vmem %s5, %s264
      %p266 = scmp.lt.s32.totalorder %s18, 1
      %s267 = scalar_select %p266, %s18, 1
      %s268 = scalar_lea.vmem %s6, %s267
      %v269 = vld [vmem:[%s257] sm:$0xff]
      %v270 = vld [vmem:[%s257 + $0x8] sm:$0xff]
      %v271 = vld [vmem:[%s257 + $0x10] sm:$0xff]
      %v272 = vld [vmem:[%s257 + $0x18] sm:$0xff]
      %v273 = vld [vmem:[%s257 + $0x20] sm:$0xff]
      %v274 = vld [vmem:[%s257 + $0x28] sm:$0xff]
      %v275 = vld [vmem:[%s257 + $0x30] sm:$0xff]
      %v276 = vld [vmem:[%s257 + $0x38] sm:$0xff]
      %v277 = vld [vmem:[%s1] sm:$0x1]
      %v279 = vlaneseq
      %v280 = vshrl.u32 %v279, 7
      %v281 = vsub.s32 0, %v280
      %v282 = vrot.slane %v277, %v281
      %v284 = vmul.f32 %v269, %v282
      %v285 = vmul.f32 %v270, %v282
      %v286 = vmul.f32 %v271, %v282
      %v287 = vmul.f32 %v272, %v282
      %v288 = vmul.f32 %v273, %v282
      %v289 = vmul.f32 %v274, %v282
      %v290 = vmul.f32 %v275, %v282
      %v291 = vmul.f32 %v276, %v282
      %v292 = vld [vmem:[%s2] sm:$0x1]
      %v294 = vlaneseq
      %v295 = vshrl.u32 %v294, 7
      %v296 = vsub.s32 0, %v295
      %v297 = vrot.slane %v292, %v296
      %v299 = vadd.f32 %v284, %v297
      %v300 = vadd.f32 %v285, %v297
      %v301 = vadd.f32 %v286, %v297
      %v302 = vadd.f32 %v287, %v297
      %v303 = vadd.f32 %v288, %v297
      %v304 = vadd.f32 %v289, %v297
      %v305 = vadd.f32 %v290, %v297
      %v306 = vadd.f32 %v291, %v297
      %v307 = vmax.f32 %v299, 0.0
      %v308 = vmax.f32 %v300, 0.0
      %v309 = vmax.f32 %v301, 0.0
      %v310 = vmax.f32 %v302, 0.0
      %v311 = vmax.f32 %v303, 0.0
      %v312 = vmax.f32 %v304, 0.0
      %v313 = vmax.f32 %v305, 0.0
      %v314 = vmax.f32 %v306, 0.0
      %v324 = vrot.slane 0.0, 7
      %v325 = vrot.slane %v307, 7
      %v326 = vrot.slane %v308, 7
      %v327 = vrot.slane %v309, 7
      %v328 = vrot.slane %v310, 7
      %v329 = vrot.slane %v311, 7
      %v330 = vrot.slane %v312, 7
      %v331 = vrot.slane %v313, 7
      %v332 = vrot.slane %v314, 7
      %vm342 = vcmask 1040384
      %v343 = vsel %vm342, 0.0, %v324
      %v344 = vsel %vm342, 0.0, %v325
      %v345 = vsel %vm342, 0.0, %v326
      %v346 = vsel %vm342, 0.0, %v327
      %v347 = vsel %vm342, 0.0, %v328
      %v348 = vsel %vm342, 0.0, %v329
      %v349 = vsel %vm342, 0.0, %v330
      %v350 = vsel %vm342, 0.0, %v331
      %v351 = vsel %vm342, 0.0, %v332
      %v352 = vsel %vm342, %v324, 0.0
      %v353 = vsel %vm342, %v325, 0.0
      %v354 = vsel %vm342, %v326, 0.0
      %v355 = vsel %vm342, %v327, 0.0
      %v356 = vsel %vm342, %v328, 0.0
      %v357 = vsel %vm342, %v329, 0.0
      %v358 = vsel %vm342, %v330, 0.0
      %v359 = vsel %vm342, %v331, 0.0
      %v360 = vsel %vm342, %v332, 0.0
      %vm379 = vcmask 1046528
      %v380 = vrot.slane %v343, 1
      %v381 = vrot.slane %v352, 1
      %v382 = vsel %vm379, %v380, %v381
      %v383 = vrot.slane %v344, 1
      %v384 = vrot.slane %v353, 1
      %v385 = vsel %vm379, %v383, %v384
      %v386 = vrot.slane %v345, 1
      %v387 = vrot.slane %v354, 1
      %v388 = vsel %vm379, %v386, %v387
      %v389 = vrot.slane %v346, 1
      %v390 = vrot.slane %v355, 1
      %v391 = vsel %vm379, %v389, %v390
      %v392 = vrot.slane %v347, 1
      %v393 = vrot.slane %v356, 1
      %v394 = vsel %vm379, %v392, %v393
      %v395 = vrot.slane %v348, 1
      %v396 = vrot.slane %v357, 1
      %v397 = vsel %vm379, %v395, %v396
      %v398 = vrot.slane %v349, 1
      %v399 = vrot.slane %v358, 1
      %v400 = vsel %vm379, %v398, %v399
      %v401 = vrot.slane %v350, 1
      %v402 = vrot.slane %v359, 1
      %v403 = vsel %vm379, %v401, %v402
      %v404 = vrot.slane %v351, 1
      %v405 = vrot.slane %v360, 1
      %v406 = vsel %vm379, %v404, %v405
      %407 = vrot.lane.b32.xlu0 %v382, 8
      %v408 = vpop.permute.xlu0 %407
      %409 = vrot.lane.b32.xlu0 %v385, 8
      %v410 = vpop.permute.xlu0 %409
      %411 = vrot.lane.b32.xlu0 %v388, 8
      %v412 = vpop.permute.xlu0 %411
      %413 = vrot.lane.b32.xlu0 %v391, 8
      %v414 = vpop.permute.xlu0 %413
      %415 = vrot.lane.b32.xlu0 %v394, 8
      %v416 = vpop.permute.xlu0 %415
      %417 = vrot.lane.b32.xlu0 %v397, 8
      %v418 = vpop.permute.xlu0 %417
      %419 = vrot.lane.b32.xlu0 %v400, 8
      %v420 = vpop.permute.xlu0 %419
      %421 = vrot.lane.b32.xlu0 %v403, 8
      %v422 = vpop.permute.xlu0 %421
      %423 = vrot.lane.b32.xlu0 %v406, 8
      %v424 = vpop.permute.xlu0 %423
      %vm434 = vcmask 1045504
      %v435 = vrot.slane %v343, 2
      %v436 = vrot.slane %v352, 2
      %v437 = vsel %vm434, %v435, %v436
      %v438 = vrot.slane %v344, 2
      %v439 = vrot.slane %v353, 2
      %v440 = vsel %vm434, %v438, %v439
      %v441 = vrot.slane %v345, 2
      %v442 = vrot.slane %v354, 2
      %v443 = vsel %vm434, %v441, %v442
      %v444 = vrot.slane %v346, 2
      %v445 = vrot.slane %v355, 2
      %v446 = vsel %vm434, %v444, %v445
      %v447 = vrot.slane %v347, 2
      %v448 = vrot.slane %v356, 2
      %v449 = vsel %vm434, %v447, %v448
      %v450 = vrot.slane %v348, 2
      %v451 = vrot.slane %v357, 2
      %v452 = vsel %vm434, %v450, %v451
      %v453 = vrot.slane %v349, 2
      %v454 = vrot.slane %v358, 2
      %v455 = vsel %vm434, %v453, %v454
      %v456 = vrot.slane %v350, 2
      %v457 = vrot.slane %v359, 2
      %v458 = vsel %vm434, %v456, %v457
      %v459 = vrot.slane %v351, 2
      %v460 = vrot.slane %v360, 2
      %v461 = vsel %vm434, %v459, %v460
      %462 = vrot.lane.b32.xlu0 %v437, 16
      %v463 = vpop.permute.xlu0 %462
      %464 = vrot.lane.b32.xlu0 %v440, 16
      %v465 = vpop.permute.xlu0 %464
      %466 = vrot.lane.b32.xlu0 %v443, 16
      %v467 = vpop.permute.xlu0 %466
      %468 = vrot.lane.b32.xlu0 %v446, 16
      %v469 = vpop.permute.xlu0 %468
      %470 = vrot.lane.b32.xlu0 %v449, 16
      %v471 = vpop.permute.xlu0 %470
      %472 = vrot.lane.b32.xlu0 %v452, 16
      %v473 = vpop.permute.xlu0 %472
      %474 = vrot.lane.b32.xlu0 %v455, 16
      %v475 = vpop.permute.xlu0 %474
      %476 = vrot.lane.b32.xlu0 %v458, 16
      %v477 = vpop.permute.xlu0 %476
      %478 = vrot.lane.b32.xlu0 %v461, 16
      %v479 = vpop.permute.xlu0 %478
      %vm489 = vcmask 64512
      %v490 = vsel %vm489, %v343, %v408
      %v491 = vsel %vm489, %v344, %v410
      %v492 = vsel %vm489, %v345, %v412
      %v493 = vsel %vm489, %v346, %v414
      %v494 = vsel %vm489, %v347, %v416
      %v495 = vsel %vm489, %v348, %v418
      %v496 = vsel %vm489, %v349, %v420
      %v497 = vsel %vm489, %v350, %v422
      %v498 = vsel %vm489, %v351, %v424
      %vm499 = vcmask 130048
      %v500 = vsel %vm499, %v490, %v463
      %v501 = vsel %vm499, %v491, %v465
      %v502 = vsel %vm499, %v492, %v467
      %v503 = vsel %vm499, %v493, %v469
      %v504 = vsel %vm499, %v494, %v471
      %v505 = vsel %vm499, %v495, %v473
      %v506 = vsel %vm499, %v496, %v475
      %v507 = vsel %vm499, %v497, %v477
      %v508 = vsel %vm499, %v498, %v479
      %v509 = vld [vmem:[%s3] sm:$0xff]
      %v510 = vld [vmem:[%s3 + $0x8] sm:$0xff]
      %v511 = vld [vmem:[%s3 + $0x10] sm:$0xff]
      %vm512 = vcmask 195584
      %v514 = vsel %vm512, %v500, 0
      %v517 = vsel %vm512, %v501, 0
      %v520 = vsel %vm512, %v502, 0
      %v523 = vsel %vm512, %v503, 0
      %v526 = vsel %vm512, %v504, 0
      %v529 = vsel %vm512, %v505, 0
      %v532 = vsel %vm512, %v506, 0
      %v535 = vsel %vm512, %v507, 0
      %537 = vmatprep.subr.mxu0 0.0
      %538 = vmatpush1.msra.mxu0 %v509
      %539 = vmatprep.subr.mxu0 0.0
      %540 = vmatpush1.msra.mxu0 %v510
      %541 = vmatprep.subr.mxu0 0.0
      %542 = vmatpush1.msra.mxu0 %v511
      %543 = vmatprep.subr.mxu0 0.0
      %544 = vmatpush1.msra.mxu0 0.0
      %545 = vmatprep.subr.mxu0 0.0
      %546 = vmatpush1.msra.mxu0 0.0
      %547 = vmatprep.subr.mxu0 0.0
      %548 = vmatpush1.msra.mxu0 0.0
      %549 = vmatprep.subr.mxu0 0.0
      %550 = vmatpush1.msra.mxu0 0.0
      %551 = vmatprep.subr.mxu0 0.0
      %552 = vmatpush1.msra.mxu0 0.0
      %553 = vmatprep.subr.mxu0 0.0
      %554 = vmatpush1.msra.mxu0 0.0
      %555 = vmatprep.subr.mxu0 0.0
      %556 = vmatpush1.msra.mxu0 0.0
      %557 = vmatprep.subr.mxu0 0.0
      %558 = vmatpush1.msra.mxu0 0.0
      %559 = vmatprep.subr.mxu0 0.0
      %560 = vmatpush1.msra.mxu0 0.0
      %561 = vmatprep.subr.mxu0 0.0
      %562 = vmatpush1.msra.mxu0 0.0
      %563 = vmatprep.subr.mxu0 0.0
      %564 = vmatpush1.msra.mxu0 0.0
      %565 = vmatprep.subr.mxu0 0.0
      %566 = vmatpush1.msra.mxu0 0.0
      %567 = vmatprep.subr.mxu0 0.0
      %568 = vmatpush1.msra.mxu0 0.0
      %569 = vmatprep.subr.mxu0 0.0
      %570 = vmatpush1.msra.mxu0 0.0
      %571 = vmatprep.subr.mxu0 0.0
      %572 = vmatpush1.msra.mxu0 0.0
      %573 = vmatprep.subr.mxu0 0.0
      %574 = vmatpush1.msra.mxu0 0.0
      %575 = vmatprep.subr.mxu0 0.0
      %576 = vmatpush1.msra.mxu0 0.0
      %577 = vmatprep.subr.mxu0 0.0
      %578 = vmatpush1.msra.mxu0 0.0
      %579 = vmatprep.subr.mxu0 0.0
      %580 = vmatpush1.msra.mxu0 0.0
      %581 = vmatprep.subr.mxu0 0.0
      %582 = vmatpush1.msra.mxu0 0.0
      %583 = vmatprep.subr.mxu0 0.0
      %584 = vmatpush1.msra.mxu0 0.0
      %585 = vmatprep.subr.mxu0 0.0
      %586 = vmatpush1.msra.mxu0 0.0
      %587 = vmatprep.subr.mxu0 0.0
      %588 = vmatpush1.msra.mxu0 0.0
      %589 = vmatprep.subr.mxu0 0.0
      %590 = vmatpush1.msra.mxu0 0.0
      %591 = vmatprep.subr.mxu0 0.0
      %592 = vmatpush1.msra.mxu0 0.0
      %593 = vmatprep.subr.mxu0 0.0
      %594 = vmatpush1.msra.mxu0 0.0
      %595 = vmatprep.subr.mxu0 0.0
      %596 = vmatpush1.msra.mxu0 0.0
      %597 = vmatprep.subr.mxu0 0.0
      %598 = vmatpush1.msra.mxu0 0.0
      %599 = vmatprep.subr.mxu0 0.0
      %600 = vmatpush1.msra.mxu0 0.0
      %601 = vmatprep.mubr.f32.mxu0 0.0
      %602 = vmatmul.mubr.f32.gmra.mrb[0].mxu0 %v514
      %v603 = vpop.f32.mrb[0].mxu0
      %v604 = vadd.f32 0.0, %v603
      %v605 = vpop.f32.mrb[0].mxu0
      %606 = vmatprep.mubr.f32.mxu0 0.0
      %607 = vmatmul.mubr.f32.gmra.mrb[0].mxu0 %v517
      %v608 = vpop.f32.mrb[0].mxu0
      %v609 = vadd.f32 0.0, %v608
      %v610 = vpop.f32.mrb[0].mxu0
      %611 = vmatprep.mubr.f32.mxu0 0.0
      %612 = vmatmul.mubr.f32.gmra.mrb[0].mxu0 %v520
      %v613 = vpop.f32.mrb[0].mxu0
      %v614 = vadd.f32 0.0, %v613
      %v615 = vpop.f32.mrb[0].mxu0
      %616 = vmatprep.mubr.f32.mxu0 0.0
      %617 = vmatmul.mubr.f32.gmra.mrb[0].mxu0 %v523
      %v618 = vpop.f32.mrb[0].mxu0
      %v619 = vadd.f32 0.0, %v618
      %v620 = vpop.f32.mrb[0].mxu0
      %621 = vmatprep.mubr.f32.mxu0 0.0
      %622 = vmatmul.mubr.f32.gmra.mrb[0].mxu0 %v526
      %v623 = vpop.f32.mrb[0].mxu0
      %v624 = vadd.f32 0.0, %v623
      %v625 = vpop.f32.mrb[0].mxu0
      %626 = vmatprep.mubr.f32.mxu0 0.0
      %627 = vmatmul.mubr.f32.gmra.mrb[0].mxu0 %v529
      %v628 = vpop.f32.mrb[0].mxu0
      %v629 = vadd.f32 0.0, %v628
      %v630 = vpop.f32.mrb[0].mxu0
      %631 = vmatprep.mubr.f32.mxu0 0.0
      %632 = vmatmul.mubr.f32.gmra.mrb[0].mxu0 %v532
      %v633 = vpop.f32.mrb[0].mxu0
      %v634 = vadd.f32 0.0, %v633
      %v635 = vpop.f32.mrb[0].mxu0
      %636 = vmatprep.mubr.f32.mxu0 0.0
      %637 = vmatmul.mubr.f32.gmra.mrb[0].mxu0 %v535
      %v638 = vpop.f32.mrb[0].mxu0
      %v639 = vadd.f32 0.0, %v638
      %v640 = vpop.f32.mrb[0].mxu0
      %641 = vdwg.mxu0
      %642 = vst.msk [vmem:[#allocation2] sm:$0xff] %vm489, %v604
      %643 = vst.msk [vmem:[#allocation2 + $0x8] sm:$0xff] %vm489, %v609
      %644 = vst.msk [vmem:[#allocation2 + $0x10] sm:$0xff] %vm489, %v614
      %645 = vst.msk [vmem:[#allocation2 + $0x18] sm:$0xff] %vm489, %v619
      %646 = vst.msk [vmem:[#allocation2 + $0x20] sm:$0xff] %vm489, %v624
      %647 = vst.msk [vmem:[#allocation2 + $0x28] sm:$0xff] %vm489, %v629
      %648 = vst.msk [vmem:[#allocation2 + $0x30] sm:$0xff] %vm489, %v634
      %649 = vst.msk [vmem:[#allocation2 + $0x38] sm:$0xff] %vm489, %v639
      %s650 = scalar_lea.vmem %s3, 24
      %v651 = vld [vmem:[%s650] sm:$0xff]
      %v652 = vld [vmem:[%s650 + $0x8] sm:$0xff]
      %v653 = vld [vmem:[%s650 + $0x10] sm:$0xff]
      %v655 = vsel %vm512, %v508, 0
      %657 = vmatprep.subr.mxu0 0.0
      %658 = vmatpush1.msra.mxu0 %v651
      %659 = vmatprep.subr.mxu0 0.0
      %660 = vmatpush1.msra.mxu0 %v652
      %661 = vmatprep.subr.mxu0 0.0
      %662 = vmatpush1.msra.mxu0 %v653
      %663 = vmatprep.subr.mxu0 0.0
      %664 = vmatpush1.msra.mxu0 0.0
      %665 = vmatprep.subr.mxu0 0.0
      %666 = vmatpush1.msra.mxu0 0.0
      %667 = vmatprep.subr.mxu0 0.0
      %668 = vmatpush1.msra.mxu0 0.0
      %669 = vmatprep.subr.mxu0 0.0
      %670 = vmatpush1.msra.mxu0 0.0
      %671 = vmatprep.subr.mxu0 0.0
      %672 = vmatpush1.msra.mxu0 0.0
      %673 = vmatprep.subr.mxu0 0.0
      %674 = vmatpush1.msra.mxu0 0.0
      %675 = vmatprep.subr.mxu0 0.0
      %676 = vmatpush1.msra.mxu0 0.0
      %677 = vmatprep.subr.mxu0 0.0
      %678 = vmatpush1.msra.mxu0 0.0
      %679 = vmatprep.subr.mxu0 0.0
      %680 = vmatpush1.msra.mxu0 0.0
      %681 = vmatprep.subr.mxu0 0.0
      %682 = vmatpush1.msra.mxu0 0.0
      %683 = vmatprep.subr.mxu0 0.0
      %684 = vmatpush1.msra.mxu0 0.0
      %685 = vmatprep.subr.mxu0 0.0
      %686 = vmatpush1.msra.mxu0 0.0
      %687 = vmatprep.subr.mxu0 0.0
      %688 = vmatpush1.msra.mxu0 0.0
      %689 = vmatprep.subr.mxu0 0.0
      %690 = vmatpush1.msra.mxu0 0.0
      %691 = vmatprep.subr.mxu0 0.0
      %692 = vmatpush1.msra.mxu0 0.0
      %693 = vmatprep.subr.mxu0 0.0
      %694 = vmatpush1.msra.mxu0 0.0
      %695 = vmatprep.subr.mxu0 0.0
      %696 = vmatpush1.msra.mxu0 0.0
      %697 = vmatprep.subr.mxu0 0.0
      %698 = vmatpush1.msra.mxu0 0.0
      %699 = vmatprep.subr.mxu0 0.0
      %700 = vmatpush1.msra.mxu0 0.0
      %701 = vmatprep.subr.mxu0 0.0
      %702 = vmatpush1.msra.mxu0 0.0
      %703 = vmatprep.subr.mxu0 0.0
      %704 = vmatpush1.msra.mxu0 0.0
      %705 = vmatprep.subr.mxu0 0.0
      %706 = vmatpush1.msra.mxu0 0.0
      %707 = vmatprep.subr.mxu0 0.0
      %708 = vmatpush1.msra.mxu0 0.0
      %709 = vmatprep.subr.mxu0 0.0
      %710 = vmatpush1.msra.mxu0 0.0
      %711 = vmatprep.subr.mxu0 0.0
      %712 = vmatpush1.msra.mxu0 0.0
      %713 = vmatprep.subr.mxu0 0.0
      %714 = vmatpush1.msra.mxu0 0.0
      %715 = vmatprep.subr.mxu0 0.0
      %716 = vmatpush1.msra.mxu0 0.0
      %717 = vmatprep.subr.mxu0 0.0
      %718 = vmatpush1.msra.mxu0 0.0
      %719 = vmatprep.subr.mxu0 0.0
      %720 = vmatpush1.msra.mxu0 0.0
      %721 = vmatprep.mubr.f32.mxu0 0.0
      %722 = vmatmul.mubr.f32.gmra.mrb[0].mxu0 %v517
      %v723 = vpop.f32.mrb[0].mxu0
      %v724 = vadd.f32 0.0, %v723
      %v725 = vpop.f32.mrb[0].mxu0
      %726 = vmatprep.mubr.f32.mxu0 0.0
      %727 = vmatmul.mubr.f32.gmra.mrb[0].mxu0 %v520
      %v728 = vpop.f32.mrb[0].mxu0
      %v729 = vadd.f32 0.0, %v728
      %v730 = vpop.f32.mrb[0].mxu0
      %731 = vmatprep.mubr.f32.mxu0 0.0
      %732 = vmatmul.mubr.f32.gmra.mrb[0].mxu0 %v523
      %v733 = vpop.f32.mrb[0].mxu0
      %v734 = vadd.f32 0.0, %v733
      %v735 = vpop.f32.mrb[0].mxu0
      %736 = vmatprep.mubr.f32.mxu0 0.0
      %737 = vmatmul.mubr.f32.gmra.mrb[0].mxu0 %v526
      %v738 = vpop.f32.mrb[0].mxu0
      %v739 = vadd.f32 0.0, %v738
      %v740 = vpop.f32.mrb[0].mxu0
      %741 = vmatprep.mubr.f32.mxu0 0.0
      %742 = vmatmul.mubr.f32.gmra.mrb[0].mxu0 %v529
      %v743 = vpop.f32.mrb[0].mxu0
      %v744 = vadd.f32 0.0, %v743
      %v745 = vpop.f32.mrb[0].mxu0
      %746 = vmatprep.mubr.f32.mxu0 0.0
      %747 = vmatmul.mubr.f32.gmra.mrb[0].mxu0 %v532
      %v748 = vpop.f32.mrb[0].mxu0
      %v749 = vadd.f32 0.0, %v748
      %v750 = vpop.f32.mrb[0].mxu0
      %751 = vmatprep.mubr.f32.mxu0 0.0
      %752 = vmatmul.mubr.f32.gmra.mrb[0].mxu0 %v535
      %v753 = vpop.f32.mrb[0].mxu0
      %v754 = vadd.f32 0.0, %v753
      %v755 = vpop.f32.mrb[0].mxu0
      %756 = vmatprep.mubr.f32.mxu0 0.0
      %757 = vmatmul.mubr.f32.gmra.mrb[0].mxu0 %v655
      %v758 = vpop.f32.mrb[0].mxu0
      %v759 = vadd.f32 0.0, %v758
      %v760 = vpop.f32.mrb[0].mxu0
      %761 = vdwg.mxu0
      %v762 = vld [vmem:[#allocation2] sm:$0xff]
      %v763 = vld [vmem:[#allocation2 + $0x8] sm:$0xff]
      %v764 = vld [vmem:[#allocation2 + $0x10] sm:$0xff]
      %v765 = vld [vmem:[#allocation2 + $0x18] sm:$0xff]
      %v766 = vld [vmem:[#allocation2 + $0x20] sm:$0xff]
      %v767 = vld [vmem:[#allocation2 + $0x28] sm:$0xff]
      %v768 = vld [vmem:[#allocation2 + $0x30] sm:$0xff]
      %v769 = vld [vmem:[#allocation2 + $0x38] sm:$0xff]
      %v770 = vadd.f32 %v762, %v724
      %v771 = vadd.f32 %v763, %v729
      %v772 = vadd.f32 %v764, %v734
      %v773 = vadd.f32 %v765, %v739
      %v774 = vadd.f32 %v766, %v744
      %v775 = vadd.f32 %v767, %v749
      %v776 = vadd.f32 %v768, %v754
      %v777 = vadd.f32 %v769, %v759
      %778 = vst.msk [vmem:[#allocation2] sm:$0xff] %vm489, %v770
      %779 = vst.msk [vmem:[#allocation2 + $0x8] sm:$0xff] %vm489, %v771
      %780 = vst.msk [vmem:[#allocation2 + $0x10] sm:$0xff] %vm489, %v772
      %781 = vst.msk [vmem:[#allocation2 + $0x18] sm:$0xff] %vm489, %v773
      %782 = vst.msk [vmem:[#allocation2 + $0x20] sm:$0xff] %vm489, %v774
      %783 = vst.msk [vmem:[#allocation2 + $0x28] sm:$0xff] %vm489, %v775
      %784 = vst.msk [vmem:[#allocation2 + $0x30] sm:$0xff] %vm489, %v776
      %785 = vst.msk [vmem:[#allocation2 + $0x38] sm:$0xff] %vm489, %v777
      %s786 = scalar_lea.vmem %s3, 48
      %v787 = vld [vmem:[%s786] sm:$0xff]
      %v788 = vld [vmem:[%s786 + $0x8] sm:$0xff]
      %v789 = vld [vmem:[%s786 + $0x10] sm:$0xff]
      %790 = vmatprep.subr.mxu0 0.0
      %791 = vmatpush1.msra.mxu0 %v787
      %792 = vmatprep.subr.mxu0 0.0
      %793 = vmatpush1.msra.mxu0 %v788
      %794 = vmatprep.subr.mxu0 0.0
      %795 = vmatpush1.msra.mxu0 %v789
      %796 = vmatprep.subr.mxu0 0.0
      %797 = vmatpush1.msra.mxu0 0.0
      %798 = vmatprep.subr.mxu0 0.0
      %799 = vmatpush1.msra.mxu0 0.0
      %800 = vmatprep.subr.mxu0 0.0
      %801 = vmatpush1.msra.mxu0 0.0
      %802 = vmatprep.subr.mxu0 0.0
      %803 = vmatpush1.msra.mxu0 0.0
      %804 = vmatprep.subr.mxu0 0.0
      %805 = vmatpush1.msra.mxu0 0.0
      %806 = vmatprep.subr.mxu0 0.0
      %807 = vmatpush1.msra.mxu0 0.0
      %808 = vmatprep.subr.mxu0 0.0
      %809 = vmatpush1.msra.mxu0 0.0
      %810 = vmatprep.subr.mxu0 0.0
      %811 = vmatpush1.msra.mxu0 0.0
      %812 = vmatprep.subr.mxu0 0.0
      %813 = vmatpush1.msra.mxu0 0.0
      %814 = vmatprep.subr.mxu0 0.0
      %815 = vmatpush1.msra.mxu0 0.0
      %816 = vmatprep.subr.mxu0 0.0
      %817 = vmatpush1.msra.mxu0 0.0
      %818 = vmatprep.subr.mxu0 0.0
      %819 = vmatpush1.msra.mxu0 0.0
      %820 = vmatprep.subr.mxu0 0.0
      %821 = vmatpush1.msra.mxu0 0.0
      %822 = vmatprep.subr.mxu0 0.0
      %823 = vmatpush1.msra.mxu0 0.0
      %824 = vmatprep.subr.mxu0 0.0
      %825 = vmatpush1.msra.mxu0 0.0
      %826 = vmatprep.subr.mxu0 0.0
      %827 = vmatpush1.msra.mxu0 0.0
      %828 = vmatprep.subr.mxu0 0.0
      %829 = vmatpush1.msra.mxu0 0.0
      %830 = vmatprep.subr.mxu0 0.0
      %831 = vmatpush1.msra.mxu0 0.0
      %832 = vmatprep.subr.mxu0 0.0
      %833 = vmatpush1.msra.mxu0 0.0
      %834 = vmatprep.subr.mxu0 0.0
      %835 = vmatpush1.msra.mxu0 0.0
      %836 = vmatprep.subr.mxu0 0.0
      %837 = vmatpush1.msra.mxu0 0.0
      %838 = vmatprep.subr.mxu0 0.0
      %839 = vmatpush1.msra.mxu0 0.0
      %840 = vmatprep.subr.mxu0 0.0
      %841 = vmatpush1.msra.mxu0 0.0
      %842 = vmatprep.subr.mxu0 0.0
      %843 = vmatpush1.msra.mxu0 0.0
      %844 = vmatprep.subr.mxu0 0.0
      %845 = vmatpush1.msra.mxu0 0.0
      %846 = vmatprep.subr.mxu0 0.0
      %847 = vmatpush1.msra.mxu0 0.0
      %848 = vmatprep.subr.mxu0 0.0
      %849 = vmatpush1.msra.mxu0 0.0
      %850 = vmatprep.subr.mxu0 0.0
      %851 = vmatpush1.msra.mxu0 0.0
      %852 = vmatprep.subr.mxu0 0.0
      %853 = vmatpush1.msra.mxu0 0.0
      %854 = vmatprep.mubr.f32.mxu0 0.0
      %855 = vmatmul.mubr.f32.gmra.mrb[0].mxu0 %v520
      %v856 = vpop.f32.mrb[0].mxu0
      %v857 = vadd.f32 0.0, %v856
      %v858 = vpop.f32.mrb[0].mxu0
      %859 = vmatprep.mubr.f32.mxu0 0.0
      %860 = vmatmul.mubr.f32.gmra.mrb[0].mxu0 %v523
      %v861 = vpop.f32.mrb[0].mxu0
      %v862 = vadd.f32 0.0, %v861
      %v863 = vpop.f32.mrb[0].mxu0
      %864 = vmatprep.mubr.f32.mxu0 0.0
      %865 = vmatmul.mubr.f32.gmra.mrb[0].mxu0 %v526
      %v866 = vpop.f32.mrb[0].mxu0
      %v867 = vadd.f32 0.0, %v866
      %v868 = vpop.f32.mrb[0].mxu0
      %869 = vmatprep.mubr.f32.mxu0 0.0
      %870 = vmatmul.mubr.f32.gmra.mrb[0].mxu0 %v529
      %v871 = vpop.f32.mrb[0].mxu0
      %v872 = vadd.f32 0.0, %v871
      %v873 = vpop.f32.mrb[0].mxu0
      %874 = vmatprep.mubr.f32.mxu0 0.0
      %875 = vmatmul.mubr.f32.gmra.mrb[0].mxu0 %v532
      %v876 = vpop.f32.mrb[0].mxu0
      %v877 = vadd.f32 0.0, %v876
      %v878 = vpop.f32.mrb[0].mxu0
      %879 = vmatprep.mubr.f32.mxu0 0.0
      %880 = vmatmul.mubr.f32.gmra.mrb[0].mxu0 %v535
      %v881 = vpop.f32.mrb[0].mxu0
      %v882 = vadd.f32 0.0, %v881
      %v883 = vpop.f32.mrb[0].mxu0
      %884 = vmatprep.mubr.f32.mxu0 0.0
      %885 = vmatmul.mubr.f32.gmra.mrb[0].mxu0 %v655
      %v886 = vpop.f32.mrb[0].mxu0
      %v887 = vadd.f32 0.0, %v886
      %v888 = vpop.f32.mrb[0].mxu0
      %889 = vmatprep.mubr.f32.mxu0 0.0
      %890 = vmatmul.mubr.f32.gmra.mrb[0].mxu0 %v514
      %v891 = vpop.f32.mrb[0].mxu0
      %v892 = vadd.f32 0.0, %v891
      %v893 = vpop.f32.mrb[0].mxu0
      %894 = vdwg.mxu0
      %v895 = vld [vmem:[#allocation2] sm:$0xff]
      %v896 = vld [vmem:[#allocation2 + $0x8] sm:$0xff]
      %v897 = vld [vmem:[#allocation2 + $0x10] sm:$0xff]
      %v898 = vld [vmem:[#allocation2 + $0x18] sm:$0xff]
      %v899 = vld [vmem:[#allocation2 + $0x20] sm:$0xff]
      %v900 = vld [vmem:[#allocation2 + $0x28] sm:$0xff]
      %v901 = vld [vmem:[#allocation2 + $0x30] sm:$0xff]
      %v902 = vld [vmem:[#allocation2 + $0x38] sm:$0xff]
      %v903 = vadd.f32 %v895, %v857
      %v904 = vadd.f32 %v896, %v862
      %v905 = vadd.f32 %v897, %v867
      %v906 = vadd.f32 %v898, %v872
      %v907 = vadd.f32 %v899, %v877
      %v908 = vadd.f32 %v900, %v882
      %v909 = vadd.f32 %v901, %v887
      %v910 = vadd.f32 %v902, %v892
      %911 = vst.msk [vmem:[#allocation2] sm:$0xff] %vm489, %v903
      %912 = vst.msk [vmem:[#allocation2 + $0x8] sm:$0xff] %vm489, %v904
      %913 = vst.msk [vmem:[#allocation2 + $0x10] sm:$0xff] %vm489, %v905
      %914 = vst.msk [vmem:[#allocation2 + $0x18] sm:$0xff] %vm489, %v906
      %915 = vst.msk [vmem:[#allocation2 + $0x20] sm:$0xff] %vm489, %v907
      %916 = vst.msk [vmem:[#allocation2 + $0x28] sm:$0xff] %vm489, %v908
      %917 = vst.msk [vmem:[#allocation2 + $0x30] sm:$0xff] %vm489, %v909
      %918 = vst.msk [vmem:[#allocation2 + $0x38] sm:$0xff] %vm489, %v910
      %v919 = vld [vmem:[#allocation2] sm:$0xff]
      %v920 = vld [vmem:[#allocation2 + $0x8] sm:$0xff]
      %v921 = vld [vmem:[#allocation2 + $0x10] sm:$0xff]
      %v922 = vld [vmem:[#allocation2 + $0x18] sm:$0xff]
      %v923 = vld [vmem:[#allocation2 + $0x20] sm:$0xff]
      %v924 = vld [vmem:[#allocation2 + $0x28] sm:$0xff]
      %v925 = vld [vmem:[#allocation2 + $0x30] sm:$0xff]
      %v926 = vld [vmem:[#allocation2 + $0x38] sm:$0xff]
      %927 = vst.msk [vmem:[%s262] sm:$0xff] %vm489, %v919
      %928 = vst.msk [vmem:[%s262 + $0x8] sm:$0xff] %vm489, %v920
      %929 = vst.msk [vmem:[%s262 + $0x10] sm:$0xff] %vm489, %v921
      %930 = vst.msk [vmem:[%s262 + $0x18] sm:$0xff] %vm489, %v922
      %931 = vst.msk [vmem:[%s262 + $0x20] sm:$0xff] %vm489, %v923
      %932 = vst.msk [vmem:[%s262 + $0x28] sm:$0xff] %vm489, %v924
      %933 = vst.msk [vmem:[%s262 + $0x30] sm:$0xff] %vm489, %v925
      %934 = vst.msk [vmem:[%s262 + $0x38] sm:$0xff] %vm489, %v926
      %v935 = vsel %vm489, %v919, 0.0
      %v936 = vsel %vm489, %v920, 0.0
      %v937 = vadd.f32 %v935, %v936
      %v938 = vsel %vm489, %v921, 0.0
      %v939 = vadd.f32 %v937, %v938
      %v940 = vsel %vm489, %v922, 0.0
      %v941 = vadd.f32 %v939, %v940
      %v942 = vsel %vm489, %v923, 0.0
      %v943 = vadd.f32 %v941, %v942
      %v944 = vsel %vm489, %v924, 0.0
      %v945 = vadd.f32 %v943, %v944
      %v946 = vsel %vm489, %v925, 0.0
      %v947 = vadd.f32 %v945, %v946
      %v948 = vsel %vm489, %v926, 0.0
      %v949 = vadd.f32 %v947, %v948
      %v950 = vrot.slane %v949, 4
      %v951 = vadd.f32 %v949, %v950
      %v952 = vrot.slane %v951, 2
      %v953 = vadd.f32 %v951, %v952
      %v954 = vrot.slane %v953, 1
      %v955 = vadd.f32 %v953, %v954
      %vm956 = vcmask 57344
      %957 = vst.msk [vmem:[%s265] sm:$0x1] %vm956, %v955
      %v958 = vmul.f32 %v919, %v919
      %v959 = vmul.f32 %v920, %v920
      %v960 = vmul.f32 %v921, %v921
      %v961 = vmul.f32 %v922, %v922
      %v962 = vmul.f32 %v923, %v923
      %v963 = vmul.f32 %v924, %v924
      %v964 = vmul.f32 %v925, %v925
      %v965 = vmul.f32 %v926, %v926
      %v966 = vsel %vm489, %v958, 0.0
      %v967 = vsel %vm489, %v959, 0.0
      %v968 = vadd.f32 %v966, %v967
      %v969 = vsel %vm489, %v960, 0.0
      %v970 = vadd.f32 %v968, %v969
      %v971 = vsel %vm489, %v961, 0.0
      %v972 = vadd.f32 %v970, %v971
      %v973 = vsel %vm489, %v962, 0.0
      %v974 = vadd.f32 %v972, %v973
      %v975 = vsel %vm489, %v963, 0.0
      %v976 = vadd.f32 %v974, %v975
      %v977 = vsel %vm489, %v964, 0.0
      %v978 = vadd.f32 %v976, %v977
      %v979 = vsel %vm489, %v965, 0.0
      %v980 = vadd.f32 %v978, %v979
      %v981 = vrot.slane %v980, 4
      %v982 = vadd.f32 %v980, %v981
      %v983 = vrot.slane %v982, 2
      %v984 = vadd.f32 %v982, %v983
      %v985 = vrot.slane %v984, 1
      %v986 = vadd.f32 %v984, %v985
      %987 = vst.msk [vmem:[%s268] sm:$0x1] %vm956, %v986
      %p988 = scmp.lt.s32.totalorder %s18, 1
      %s989 = scalar_select %p988, %s18, 1
      %s990 = smul.addr %s989, 8
      %s991 = smul.addr %s990, 8
      %s992 = scalar_lea.vmem %s4, %s991
      %p993 = scmp.lt.s32.totalorder %s18, 1
      %s994 = scalar_select %p993, %s18, 1
      %s995 = scalar_lea.vmem %s5, %s994
      %p996 = scmp.lt.s32.totalorder %s18, 1
      %s997 = scalar_select %p996, %s18, 1
      %s998 = scalar_lea.vmem %s6, %s997
      // Predicated region
      $region37: #{encoder_block_forward.4} parent=35 // pred_check
        %p999 = pneg %p125
      $region38: #{encoder_block_forward.4} parent=35 // pred_check_branch
        %1001 = sbr.rel (%p999) target = $region40
      $region39: #{encoder_block_forward.4} parent=35 // pred_region
        _
      $region40: #{encoder_block_forward.4} parent=35 // pred_fallthru
        _
      // Predicated region
      $region41: #{encoder_block_forward.4} parent=35 // pred_check
        %p1002 = pneg %p151
      $region42: #{encoder_block_forward.4} parent=35 // pred_check_branch
        %1004 = sbr.rel (%p1002) target = $region44
      $region43: #{encoder_block_forward.4} parent=35 // pred_region
        _
      $region44: #{encoder_block_forward.4} parent=35 // pred_fallthru
        _
      // Predicated region
      $region45: #{encoder_block_forward.4} parent=35 // pred_check
        %p1005 = pneg %p177
      $region46: #{encoder_block_forward.4} parent=35 // pred_check_branch
        %1007 = sbr.rel (%p1005) target = $region48
      $region47: #{encoder_block_forward.4} parent=35 // pred_region
        _
      $region48: #{encoder_block_forward.4} parent=35 // pred_fallthru
        _
    $region36: #{encoder_block_forward.4} parent=5 // pred_fallthru
      _
    %p1008 = scmp.le.s32.totalorder 2, %s13
    // Predicated region
    $region49: #{encoder_block_forward.4} parent=5 // pred_check
      %p1009 = pneg %p1008
    $region50: #{encoder_block_forward.4} parent=5 // pred_check_branch
      %1011 = sbr.rel (%p1009) target = $region52
    $region51: #{encoder_block_forward.4} parent=5 // pred_region
      %s1012 = ssub.s32 %s13, 2
      // Predicated region
      $region53: #{encoder_block_forward.4} parent=51 // pred_check
        %p1013 = pneg %p131
      $region54: #{encoder_block_forward.4} parent=51 // pred_check_branch
        %1015 = sbr.rel (%p1013) target = $region56
      $region55: #{encoder_block_forward.4} parent=51 // pred_region
        %p1016 = scmp.lt.s32.totalorder %s19, 1
        %s1017 = scalar_select %p1016, %s19, 1
        %s1018 = smul.addr %s1017, 8
        %s1019 = smul.addr %s1018, 8
        %s1020 = scalar_lea.vmem %s4, %s1019
      $region56: #{encoder_block_forward.4} parent=51 // pred_fallthru
        _
      // Predicated region
      $region57: #{encoder_block_forward.4} parent=51 // pred_check
        %p1021 = pneg %p157
      $region58: #{encoder_block_forward.4} parent=51 // pred_check_branch
        %1023 = sbr.rel (%p1021) target = $region60
      $region59: #{encoder_block_forward.4} parent=51 // pred_region
        %p1024 = scmp.lt.s32.totalorder %s19, 1
        %s1025 = scalar_select %p1024, %s19, 1
        %s1026 = scalar_lea.vmem %s5, %s1025
      $region60: #{encoder_block_forward.4} parent=51 // pred_fallthru
        _
      // Predicated region
      $region61: #{encoder_block_forward.4} parent=51 // pred_check
        %p1027 = pneg %p183
      $region62: #{encoder_block_forward.4} parent=51 // pred_check_branch
        %1029 = sbr.rel (%p1027) target = $region64
      $region63: #{encoder_block_forward.4} parent=51 // pred_region
        %p1030 = scmp.lt.s32.totalorder %s19, 1
        %s1031 = scalar_select %p1030, %s19, 1
        %s1032 = scalar_lea.vmem %s6, %s1031
      $region64: #{encoder_block_forward.4} parent=51 // pred_fallthru
        _
    $region52: #{encoder_block_forward.4} parent=5 // pred_fallthru
      _
  $region6: #{encoder_block_forward.4} parent=0 // loop_footer
    %s17 = sadd.s32 1, %s13
  $region7: #{encoder_block_forward.4} parent=0 // loop_footer_branch
    %12 = sbr.rel target = $region3
  $region8: #{encoder_block_forward.4} parent=0 // loop_exit
    _

</llo_original>
